<compile_context>
chip_gen: v7x
topology: tpu7x:2x2x1
jax: 0.10.0
libtpu: 0.0.40
codegen_flags: <defaults>
</compile_context>

<pallas_src>
import functools

import jax
import jax.numpy as jnp
from jax import lax
from jax.experimental import pallas as pl
from jax.experimental.pallas import tpu as pltpu


def _round_up(x, m):
    return (x + m - 1) // m * m


def _pick_band(ho, target):
    """Largest divisor of `ho` that is <= target (>= 1)."""
    b = max(1, min(target, ho))
    while ho % b:
        b -= 1
    return b


def _vmem_limit_bytes():
    cap = 64 * 1024 * 1024
    try:
        cap = int(getattr(pltpu.get_tpu_info(), "vmem_capacity_bytes", cap))
    except Exception:
        pass
    # Leave ~25% headroom for compiler-internal scratch / double buffers:
    # v5e/v6e (128 MiB) -> 96 MiB, v7x (64 MiB) -> 48 MiB.
    return int(cap * 3 // 4)


# ------------------------------ Pallas kernel -------------------------------

def _fused_resblock_kernel(xcol_ref, xc_ref, w1_ref, wd_ref, b1_ref, bd_ref,
                           w2_ref, b2_ref, o_ref, y1sp_ref,
                           *, band, Wo, alpha1, alpha2, has_downsample):
    """One (batch, row-band) step of the fused ResidualBlockWithStride.

    xcol_ref : (1, 1, (band+2)*Wo, 9*C) bf16  strided im2col of x (band + halo rows)
    xc_ref   : (1, 1, band*Wo, C|cop)   f32   decimated x (identity / 1x1 conv input)
    w1_ref   : (9*C, cop)               bf16  conv1 weight
    wd_ref   : (C, cop)                 f32   1x1 downsample weight (unused if no downsample)
    b1/bd/b2 : (1, cop)                 f32
    w2_ref   : (3, 3*cop, cop)          bf16  conv2 weight grouped by row-tap
    o_ref    : (1, 1, band*Wo, cop)
    y1sp_ref : (band+2, Wp, cop)        bf16  VMEM scratch, Wp >= Wo + 2
    """
    cop = w1_ref.shape[-1]
    Wp = y1sp_ref.shape[1]
    rows = band + 2
    m_out = band * Wo

    # ---- conv1 + bias + LeakyReLU(alpha1) for the band rows + 1 halo row each side.
    y1 = jnp.dot(xcol_ref[0, 0], w1_ref[...], preferred_element_type=jnp.float32)
    y1 = y1 + b1_ref[...]
    y1 = jnp.where(y1 >= 0, y1, alpha1 * y1)            # ((band+2)*Wo, cop) f32
    y1 = y1.reshape(rows, Wo, cop)

    # ---- Stage y1 (bf16) into the spatial scratch; only the thin column halo
    # is (re)zeroed every step, never the whole buffer.
    y1sp_ref[:, 1:Wo + 1, :] = y1.astype(y1sp_ref.dtype)
    y1sp_ref[:, 0:1, :] = jnp.zeros((rows, 1, cop), y1sp_ref.dtype)
    y1sp_ref[:, Wo + 1:Wp, :] = jnp.zeros((rows, Wp - Wo - 1, cop), y1sp_ref.dtype)

    # Halo rows that fall outside the image must be zero (conv2 zero padding).
    bidx = pl.program_id(1)
    nbands = pl.num_programs(1)

    @pl.when(bidx == 0)
    def _():
        y1sp_ref[0:1, :, :] = jnp.zeros((1, Wp, cop), y1sp_ref.dtype)

    @pl.when(bidx == nbands - 1)
    def _():
        y1sp_ref[rows - 1:rows, :, :] = jnp.zeros((1, Wp, cop), y1sp_ref.dtype)

    # ---- Identity path in f32 (narrow K=C matmul; plain add when stride == 1).
    if has_downsample:
        ident = jnp.dot(xc_ref[0, 0], wd_ref[...],
                        preferred_element_type=jnp.float32) + bd_ref[...]
    else:
        ident = xc_ref[0, 0]

    # ---- conv2 (3x3, stride 1): 3 matmuls of K = 3*cop (column taps grouped).
    acc = jnp.zeros((m_out, cop), jnp.float32)
    for di in range(3):
        xcat = jnp.concatenate(
            [y1sp_ref[di:di + band, dj:dj + Wo, :] for dj in range(3)], axis=-1)
        acc = acc + jnp.dot(xcat.reshape(m_out, 3 * cop), w2_ref[di],
                            preferred_element_type=jnp.float32)
    acc = acc + b2_ref[...]
    out = jnp.where(acc >= 0, acc, alpha2 * acc)

    o_ref[0, 0] = (out + ident).astype(o_ref.dtype)


# ------------------------------- JAX wrapper ---------------------------------

def _im2col_3x3(x_nhwc, stride):
    """3x3, pad=1 patch extraction -> (N, Ho, Wo, 9*C), tap-major columns."""
    N, H, W, C = x_nhwc.shape
    xp = jnp.pad(x_nhwc, ((0, 0), (1, 1), (1, 1), (0, 0)))
    Ho = (H + 2 - 3) // stride + 1
    Wo = (W + 2 - 3) // stride + 1
    cols = []
    for di in range(3):
        for dj in range(3):
            cols.append(xp[:, di:di + stride * (Ho - 1) + 1:stride,
                           dj:dj + stride * (Wo - 1) + 1:stride, :])
    return jnp.concatenate(cols, axis=-1), Ho, Wo


def residual_block_with_stride(x_nchw, params, stride=2, band_rows=16,
                               out_dtype=jnp.float32):
    """Forward pass matching the PyTorch ResidualBlockWithStride module."""
    w1, b1, w2, b2 = params["w1"], params["b1"], params["w2"], params["b2"]
    N, C, H, W = x_nchw.shape
    out_ch = w1.shape[0]
    cop = _round_up(out_ch, 128)          # lane-dense / MXU-aligned channel dim
    has_downsample = stride != 1

    x_nhwc = jnp.transpose(x_nchw, (0, 2, 3, 1)).astype(jnp.float32)

    # conv1 patches, banded over output rows with a 1-row halo per band.
    xcol, Ho, Wo = _im2col_3x3(x_nhwc, stride)               # (N, Ho, Wo, 9C)
    band = _pick_band(Ho, band_rows)
    n_bands = Ho // band
    k1 = 9 * C

    xcolp = jnp.pad(xcol, ((0, 0), (1, 1), (0, 0), (0, 0)))  # row halo
    xcolb = jnp.stack([xcolp[:, b * band:b * band + band + 2]
                       for b in range(n_bands)], axis=1)     # (N, nb, band+2, Wo, 9C)
    xcolb = xcolb.reshape(N, n_bands, (band + 2) * Wo, k1).astype(jnp.bfloat16)

    # Decimated input (center tap) for the identity / 1x1 downsample path, f32.
    xc = x_nhwc[:, ::stride, ::stride, :][:, :Ho, :Wo, :]    # (N, Ho, Wo, C)
    if has_downsample:
        xcb = xc.reshape(N, n_bands, band * Wo, C)
        wd_m = params["wd"].reshape(out_ch, C).T
        wd_m = jnp.pad(wd_m, ((0, 0), (0, cop - out_ch))).astype(jnp.float32)
        bd_v = params["bd"].astype(jnp.float32)
    else:
        assert C == out_ch, "stride=1 residual add requires in_ch == out_ch"
        xcb = jnp.pad(xc, ((0, 0), (0, 0), (0, 0), (0, cop - out_ch)))
        xcb = xcb.reshape(N, n_bands, band * Wo, cop)
        wd_m = jnp.zeros((C, cop), jnp.float32)              # unused
        bd_v = jnp.zeros((out_ch,), jnp.float32)             # unused
    xcb = xcb.astype(jnp.float32)
    kc = xcb.shape[-1]

    # conv1 weight (O,I,3,3) -> (9C, cop) in im2col (tap-major, channel) order.
    w1m = jnp.transpose(w1, (2, 3, 1, 0)).reshape(k1, out_ch)
    w1m = jnp.pad(w1m, ((0, 0), (0, cop - out_ch))).astype(jnp.bfloat16)

    # conv2 weight (O,I,3,3) -> (3, 3*cop, cop): column taps grouped along K.
    w2g = jnp.transpose(w2, (2, 3, 1, 0))                    # (3, 3, I, O)
    w2g = jnp.pad(w2g, ((0, 0), (0, 0), (0, cop - out_ch), (0, cop - out_ch)))
    w2g = w2g.reshape(3, 3 * cop, cop).astype(jnp.bfloat16)

    cpad = (0, cop - out_ch)
    b1p = jnp.pad(b1, cpad).reshape(1, cop).astype(jnp.float32)
    b2p = jnp.pad(b2, cpad).reshape(1, cop).astype(jnp.float32)
    bdp = jnp.pad(bd_v, cpad).reshape(1, cop).astype(jnp.float32)

    Wp = _round_up(Wo + 2, 8)                 # sublane-friendly scratch width
    m_in, m_out = (band + 2) * Wo, band * Wo

    out = pl.pallas_call(
        functools.partial(_fused_resblock_kernel, band=band, Wo=Wo,
                          alpha1=0.01, alpha2=0.1,
                          has_downsample=has_downsample),
        out_shape=jax.ShapeDtypeStruct((N, n_bands, m_out, cop), out_dtype),
        grid_spec=pltpu.PrefetchScalarGridSpec(
            num_scalar_prefetch=0,
            grid=(N, n_bands),
            in_specs=[
                pl.BlockSpec((1, 1, m_in, k1), lambda n, b: (n, b, 0, 0)),   # xcol
                pl.BlockSpec((1, 1, m_out, kc), lambda n, b: (n, b, 0, 0)),  # x center
                pl.BlockSpec((k1, cop), lambda n, b: (0, 0)),                # w1
                pl.BlockSpec((C, cop), lambda n, b: (0, 0)),                 # wd
                pl.BlockSpec((1, cop), lambda n, b: (0, 0)),                 # b1
                pl.BlockSpec((1, cop), lambda n, b: (0, 0)),                 # bd
                pl.BlockSpec((3, 3 * cop, cop), lambda n, b: (0, 0, 0)),     # w2
                pl.BlockSpec((1, cop), lambda n, b: (0, 0)),                 # b2
            ],
            out_specs=pl.BlockSpec((1, 1, m_out, cop), lambda n, b: (n, b, 0, 0)),
            scratch_shapes=[pltpu.VMEM((band + 2, Wp, cop), jnp.bfloat16)]),
        compiler_params=pltpu.CompilerParams(
            dimension_semantics=("parallel", "parallel"),
            vmem_limit_bytes=_vmem_limit_bytes()),
    )(xcolb, xcb, w1m, wd_m, b1p, bdp, w2g, b2p)

    out = out.reshape(N, Ho, Wo, cop)[..., :out_ch]
    # TODO(synk): downstream consumers could take NHWC (padded) directly and
    # skip this slice + transpose round trip.
    return jnp.transpose(out, (0, 3, 1, 2))                  # back to NCHW


# --------------------------- pure-JAX reference ------------------------------

def _ref_forward(x, params, stride=2):
    dn = ("NCHW", "OIHW", "NCHW")
    out = lax.conv_general_dilated(x, params["w1"], (stride, stride),
                                   ((1, 1), (1, 1)), dimension_numbers=dn)
    out = out + params["b1"][None, :, None, None]
    out = jnp.where(out >= 0, out, 0.01 * out)
    out = lax.conv_general_dilated(out, params["w2"], (1, 1), ((1, 1), (1, 1)),
                                   dimension_numbers=dn)
    out = out + params["b2"][None, :, None, None]
    out = jnp.where(out >= 0, out, 0.1 * out)
    if stride != 1:
        ident = lax.conv_general_dilated(x, params["wd"], (stride, stride),
                                         ((0, 0), (0, 0)), dimension_numbers=dn)
        ident = ident + params["bd"][None, :, None, None]
    else:
        ident = x
    return out + ident


# --------------------------------- main --------------------------------------

if __name__ == "__main__":
    def make_params(key, in_ch, out_ch, with_down):
        ks = jax.random.split(key, 6)
        p = {
            "w1": jax.random.normal(ks[0], (out_ch, in_ch, 3, 3), jnp.float32) * 0.1,
            "b1": jax.random.normal(ks[1], (out_ch,), jnp.float32) * 0.1,
            "w2": jax.random.normal(ks[2], (out_ch, out_ch, 3, 3), jnp.float32) * 0.1,
            "b2": jax.random.normal(ks[3], (out_ch,), jnp.float32) * 0.1,
        }
        if with_down:
            p["wd"] = jax.random.normal(ks[4], (out_ch, in_ch, 1, 1), jnp.float32) * 0.1
            p["bd"] = jax.random.normal(ks[5], (out_ch,), jnp.float32) * 0.1
        return p

    key = jax.random.PRNGKey(0)
    kp2, kx2, kp1, kx1 = jax.random.split(key, 4)

    # Case 1: stride 2 (with 1x1 downsample), 2 row-bands exercised.
    in_ch, out_ch, stride = 4, 8, 2
    N, H, W = 2, 16, 16
    params = make_params(kp2, in_ch, out_ch, True)
    x = jax.random.normal(kx2, (N, in_ch, H, W), jnp.float32)
    out = jax.block_until_ready(
        residual_block_with_stride(x, params, stride=stride, band_rows=4))
    ref = jax.block_until_ready(_ref_forward(x, params, stride=stride))
    assert out.shape == (N, out_ch, H // stride, W // stride), out.shape
    err = float(jnp.max(jnp.abs(out - ref)))
    assert jnp.allclose(out, ref, atol=3e-2, rtol=3e-2), err

    # Case 2: stride 1 (no downsample; identity added exactly in f32).
    params1 = make_params(kp1, 8, 8, False)
    x1 = jax.random.normal(kx1, (1, 8, 8, 8), jnp.float32)
    out1 = jax.block_until_ready(
        residual_block_with_stride(x1, params1, stride=1, band_rows=4))
    ref1 = jax.block_until_ready(_ref_forward(x1, params1, stride=1))
    assert out1.shape == (1, 8, 8, 8), out1.shape
    err1 = float(jnp.max(jnp.abs(out1 - ref1)))
    assert jnp.allclose(out1, ref1, atol=3e-2, rtol=3e-2), err1

    print("KERNEL_OK")
</pallas_src>

<mosaic_0001>
module attributes {stable_mosaic.version = 11 : i64} {
  func.func @_fused_resblock_kernel(%arg0: i32, %arg1: i32, %arg2: memref<1x1x48x36xbf16, #tpu.memory_space<vmem>>, %arg3: memref<1x1x32x4xf32, #tpu.memory_space<vmem>>, %arg4: memref<36x128xbf16, #tpu.memory_space<vmem>>, %arg5: memref<4x128xf32, #tpu.memory_space<vmem>>, %arg6: memref<1x128xf32, #tpu.memory_space<vmem>>, %arg7: memref<1x128xf32, #tpu.memory_space<vmem>>, %arg8: memref<3x384x128xbf16, #tpu.memory_space<vmem>>, %arg9: memref<1x128xf32, #tpu.memory_space<vmem>>, %arg10: memref<1x1x32x128xf32, #tpu.memory_space<vmem>>, %arg11: memref<6x16x128xbf16, #tpu.memory_space<vmem>>) attributes {dimension_semantics = [#tpu.dimension_semantics<parallel>, #tpu.dimension_semantics<parallel>], iteration_bounds = array<i64: 2, 2>, scalar_prefetch = 0 : i64, scratch_operands = 1 : i64, tpu.core_type = #tpu.core_type<tc>, window_params = [{transform_indices = @transform_0, window_bounds = array<i64: 1, 1, 48, 36>}, {transform_indices = @transform_1, window_bounds = array<i64: 1, 1, 32, 4>}, {pipeline_mode = #tpu.pipeline_mode<synchronous>, transform_indices = @transform_2, window_bounds = array<i64: 36, 128>}, {pipeline_mode = #tpu.pipeline_mode<synchronous>, transform_indices = @transform_3, window_bounds = array<i64: 4, 128>}, {pipeline_mode = #tpu.pipeline_mode<synchronous>, transform_indices = @transform_4, window_bounds = array<i64: 1, 128>}, {pipeline_mode = #tpu.pipeline_mode<synchronous>, transform_indices = @transform_5, window_bounds = array<i64: 1, 128>}, {pipeline_mode = #tpu.pipeline_mode<synchronous>, transform_indices = @transform_6, window_bounds = array<i64: 3, 384, 128>}, {pipeline_mode = #tpu.pipeline_mode<synchronous>, transform_indices = @transform_7, window_bounds = array<i64: 1, 128>}, {transform_indices = @transform_8, window_bounds = array<i64: 1, 1, 32, 128>}]} {
    %c0 = arith.constant 0 : index
    %c0_0 = arith.constant 0 : index
    %c0_1 = arith.constant 0 : index
    %c0_2 = arith.constant 0 : index
    %0 = vector.load %arg2[%c0, %c0_0, %c0_1, %c0_2] : memref<1x1x48x36xbf16, #tpu.memory_space<vmem>>, vector<1x1x48x36xbf16>
    %1 = vector.shape_cast %0 : vector<1x1x48x36xbf16> to vector<48x36xbf16>
    %c0_3 = arith.constant 0 : index
    %c0_4 = arith.constant 0 : index
    %2 = vector.load %arg4[%c0_3, %c0_4] : memref<36x128xbf16, #tpu.memory_space<vmem>>, vector<36x128xbf16>
    %cst = arith.constant dense<0.000000e+00> : vector<48x128xf32>
    %3 = tpu.matmul %1, %2, %cst {dimension_numbers = #tpu.dot_dimension_numbers<[1], [0], [0], [1], [0, 0, 1, 1], [], []>} : vector<48x36xbf16>, vector<36x128xbf16>, vector<48x128xf32> -> vector<48x128xf32>
    %c0_5 = arith.constant 0 : index
    %c0_6 = arith.constant 0 : index
    %4 = vector.load %arg6[%c0_5, %c0_6] : memref<1x128xf32, #tpu.memory_space<vmem>>, vector<1x128xf32>
    %5 = vector.broadcast %4 : vector<1x128xf32> to vector<48x128xf32>
    %6 = arith.addf %3, %5 : vector<48x128xf32>
    %cst_7 = arith.constant 0.000000e+00 : f32
    %7 = vector.broadcast %cst_7 : f32 to vector<48x128xf32>
    %8 = arith.cmpf oge, %6, %7 : vector<48x128xf32>
    %cst_8 = arith.constant 0.00999999977 : f32
    %9 = vector.broadcast %cst_8 : f32 to vector<48x128xf32>
    %10 = arith.mulf %9, %6 : vector<48x128xf32>
    %11 = arith.select %8, %6, %10 : vector<48x128xi1>, vector<48x128xf32>
    %12 = vector.shape_cast %11 : vector<48x128xf32> to vector<6x8x128xf32>
    %13 = arith.truncf %12 : vector<6x8x128xf32> to vector<6x8x128xbf16>
    %c0_9 = arith.constant 0 : index
    %c1 = arith.constant 1 : index
    %c0_10 = arith.constant 0 : index
    %14 = vector.load %arg11[%c0_9, %c1, %c0_10] : memref<6x16x128xbf16, #tpu.memory_space<vmem>>, vector<6x8x128xbf16>
    tpu.vector_store %arg11[%c0_9, %c1, %c0_10], %13 {strides = array<i32>} : memref<6x16x128xbf16, #tpu.memory_space<vmem>>, vector<6x8x128xbf16>,
    %cst_11 = arith.constant 0.000000e+00 : bf16
    %15 = vector.broadcast %cst_11 : bf16 to vector<6x1x128xbf16>
    %c0_12 = arith.constant 0 : index
    %c0_13 = arith.constant 0 : index
    %c0_14 = arith.constant 0 : index
    %16 = vector.load %arg11[%c0_12, %c0_13, %c0_14] : memref<6x16x128xbf16, #tpu.memory_space<vmem>>, vector<6x1x128xbf16>
    tpu.vector_store %arg11[%c0_12, %c0_13, %c0_14], %15 {strides = array<i32>} : memref<6x16x128xbf16, #tpu.memory_space<vmem>>, vector<6x1x128xbf16>,
    %cst_15 = arith.constant 0.000000e+00 : bf16
    %17 = vector.broadcast %cst_15 : bf16 to vector<6x7x128xbf16>
    %c0_16 = arith.constant 0 : index
    %c9 = arith.constant 9 : index
    %c0_17 = arith.constant 0 : index
    %18 = vector.load %arg11[%c0_16, %c9, %c0_17] : memref<6x16x128xbf16, #tpu.memory_space<vmem>>, vector<6x7x128xbf16>
    tpu.vector_store %arg11[%c0_16, %c9, %c0_17], %17 {strides = array<i32>} : memref<6x16x128xbf16, #tpu.memory_space<vmem>>, vector<6x7x128xbf16>,
    %c0_i32 = arith.constant 0 : i32
    %19 = arith.cmpi eq, %arg1, %c0_i32 : i32
    %20 = arith.extui %19 : i1 to i32
    %c0_i32_18 = arith.constant 0 : i32
    %21 = arith.cmpi ne, %20, %c0_i32_18 : i32
    scf.if %21 {
      %cst_76 = arith.constant 0.000000e+00 : bf16
      %72 = vector.broadcast %cst_76 : bf16 to vector<1x16x128xbf16>
      %c0_77 = arith.constant 0 : index
      %c0_78 = arith.constant 0 : index
      %c0_79 = arith.constant 0 : index
      %73 = vector.load %arg11[%c0_77, %c0_78, %c0_79] : memref<6x16x128xbf16, #tpu.memory_space<vmem>>, vector<1x16x128xbf16>
      tpu.vector_store %arg11[%c0_77, %c0_78, %c0_79], %72 {strides = array<i32>} : memref<6x16x128xbf16, #tpu.memory_space<vmem>>, vector<1x16x128xbf16>,
    } else {
    }
    %c1_i32 = arith.constant 1 : i32
    %22 = arith.cmpi eq, %arg1, %c1_i32 : i32
    %23 = arith.extui %22 : i1 to i32
    %c0_i32_19 = arith.constant 0 : i32
    %24 = arith.cmpi ne, %23, %c0_i32_19 : i32
    scf.if %24 {
      %cst_76 = arith.constant 0.000000e+00 : bf16
      %72 = vector.broadcast %cst_76 : bf16 to vector<1x16x128xbf16>
      %c5 = arith.constant 5 : index
      %c0_77 = arith.constant 0 : index
      %c0_78 = arith.constant 0 : index
      %73 = vector.load %arg11[%c5, %c0_77, %c0_78] : memref<6x16x128xbf16, #tpu.memory_space<vmem>>, vector<1x16x128xbf16>
      tpu.vector_store %arg11[%c5, %c0_77, %c0_78], %72 {strides = array<i32>} : memref<6x16x128xbf16, #tpu.memory_space<vmem>>, vector<1x16x128xbf16>,
    } else {
    }
    %c0_20 = arith.constant 0 : index
    %c0_21 = arith.constant 0 : index
    %c0_22 = arith.constant 0 : index
    %c0_23 = arith.constant 0 : index
    %25 = vector.load %arg3[%c0_20, %c0_21, %c0_22, %c0_23] : memref<1x1x32x4xf32, #tpu.memory_space<vmem>>, vector<1x1x32x4xf32>
    %26 = vector.shape_cast %25 : vector<1x1x32x4xf32> to vector<32x4xf32>
    %c0_24 = arith.constant 0 : index
    %c0_25 = arith.constant 0 : index
    %27 = vector.load %arg5[%c0_24, %c0_25] : memref<4x128xf32, #tpu.memory_space<vmem>>, vector<4x128xf32>
    %cst_26 = arith.constant dense<0.000000e+00> : vector<32x128xf32>
    %28 = tpu.matmul %26, %27, %cst_26 {dimension_numbers = #tpu.dot_dimension_numbers<[1], [0], [0], [1], [0, 0, 1, 1], [], []>} : vector<32x4xf32>, vector<4x128xf32>, vector<32x128xf32> -> vector<32x128xf32>
    %c0_27 = arith.constant 0 : index
    %c0_28 = arith.constant 0 : index
    %29 = vector.load %arg7[%c0_27, %c0_28] : memref<1x128xf32, #tpu.memory_space<vmem>>, vector<1x128xf32>
    %30 = vector.broadcast %29 : vector<1x128xf32> to vector<32x128xf32>
    %31 = arith.addf %28, %30 : vector<32x128xf32>
    %cst_29 = arith.constant 0.000000e+00 : f32
    %32 = vector.broadcast %cst_29 : f32 to vector<32x128xf32>
    %c0_30 = arith.constant 0 : index
    %c0_31 = arith.constant 0 : index
    %c0_32 = arith.constant 0 : index
    %33 = vector.load %arg11[%c0_30, %c0_31, %c0_32] : memref<6x16x128xbf16, #tpu.memory_space<vmem>>, vector<4x8x128xbf16>
    %c0_33 = arith.constant 0 : index
    %c1_34 = arith.constant 1 : index
    %c0_35 = arith.constant 0 : index
    %34 = vector.load %arg11[%c0_33, %c1_34, %c0_35] : memref<6x16x128xbf16, #tpu.memory_space<vmem>>, vector<4x8x128xbf16>
    %c0_36 = arith.constant 0 : index
    %c2 = arith.constant 2 : index
    %c0_37 = arith.constant 0 : index
    %35 = vector.load %arg11[%c0_36, %c2, %c0_37] : memref<6x16x128xbf16, #tpu.memory_space<vmem>>, vector<4x8x128xbf16>
    %36 = tpu.concatenate %33, %34, %35 in 2 : vector<4x8x128xbf16>, vector<4x8x128xbf16>, vector<4x8x128xbf16> -> vector<4x8x384xbf16>
    %37 = vector.shape_cast %36 : vector<4x8x384xbf16> to vector<32x384xbf16>
    %c0_38 = arith.constant 0 : index
    %c0_39 = arith.constant 0 : index
    %c0_40 = arith.constant 0 : index
    %38 = vector.load %arg8[%c0_38, %c0_39, %c0_40] : memref<3x384x128xbf16, #tpu.memory_space<vmem>>, vector<1x384x128xbf16>
    %39 = vector.shape_cast %38 : vector<1x384x128xbf16> to vector<384x128xbf16>
    %cst_41 = arith.constant dense<0.000000e+00> : vector<32x128xf32>
    %40 = tpu.matmul %37, %39, %cst_41 {dimension_numbers = #tpu.dot_dimension_numbers<[1], [0], [0], [1], [0, 0, 1, 1], [], []>} : vector<32x384xbf16>, vector<384x128xbf16>, vector<32x128xf32> -> vector<32x128xf32>
    %41 = arith.addf %32, %40 : vector<32x128xf32>
    %c1_42 = arith.constant 1 : index
    %c0_43 = arith.constant 0 : index
    %c0_44 = arith.constant 0 : index
    %42 = vector.load %arg11[%c1_42, %c0_43, %c0_44] : memref<6x16x128xbf16, #tpu.memory_space<vmem>>, vector<4x8x128xbf16>
    %c1_45 = arith.constant 1 : index
    %c1_46 = arith.constant 1 : index
    %c0_47 = arith.constant 0 : index
    %43 = vector.load %arg11[%c1_45, %c1_46, %c0_47] : memref<6x16x128xbf16, #tpu.memory_space<vmem>>, vector<4x8x128xbf16>
    %c1_48 = arith.constant 1 : index
    %c2_49 = arith.constant 2 : index
    %c0_50 = arith.constant 0 : index
    %44 = vector.load %arg11[%c1_48, %c2_49, %c0_50] : memref<6x16x128xbf16, #tpu.memory_space<vmem>>, vector<4x8x128xbf16>
    %45 = tpu.concatenate %42, %43, %44 in 2 : vector<4x8x128xbf16>, vector<4x8x128xbf16>, vector<4x8x128xbf16> -> vector<4x8x384xbf16>
    %46 = vector.shape_cast %45 : vector<4x8x384xbf16> to vector<32x384xbf16>
    %c1_51 = arith.constant 1 : index
    %c0_52 = arith.constant 0 : index
    %c0_53 = arith.constant 0 : index
    %47 = vector.load %arg8[%c1_51, %c0_52, %c0_53] : memref<3x384x128xbf16, #tpu.memory_space<vmem>>, vector<1x384x128xbf16>
    %48 = vector.shape_cast %47 : vector<1x384x128xbf16> to vector<384x128xbf16>
    %cst_54 = arith.constant dense<0.000000e+00> : vector<32x128xf32>
    %49 = tpu.matmul %46, %48, %cst_54 {dimension_numbers = #tpu.dot_dimension_numbers<[1], [0], [0], [1], [0, 0, 1, 1], [], []>} : vector<32x384xbf16>, vector<384x128xbf16>, vector<32x128xf32> -> vector<32x128xf32>
    %50 = arith.addf %41, %49 : vector<32x128xf32>
    %c2_55 = arith.constant 2 : index
    %c0_56 = arith.constant 0 : index
    %c0_57 = arith.constant 0 : index
    %51 = vector.load %arg11[%c2_55, %c0_56, %c0_57] : memref<6x16x128xbf16, #tpu.memory_space<vmem>>, vector<4x8x128xbf16>
    %c2_58 = arith.constant 2 : index
    %c1_59 = arith.constant 1 : index
    %c0_60 = arith.constant 0 : index
    %52 = vector.load %arg11[%c2_58, %c1_59, %c0_60] : memref<6x16x128xbf16, #tpu.memory_space<vmem>>, vector<4x8x128xbf16>
    %c2_61 = arith.constant 2 : index
    %c2_62 = arith.constant 2 : index
    %c0_63 = arith.constant 0 : index
    %53 = vector.load %arg11[%c2_61, %c2_62, %c0_63] : memref<6x16x128xbf16, #tpu.memory_space<vmem>>, vector<4x8x128xbf16>
    %54 = tpu.concatenate %51, %52, %53 in 2 : vector<4x8x128xbf16>, vector<4x8x128xbf16>, vector<4x8x128xbf16> -> vector<4x8x384xbf16>
    %55 = vector.shape_cast %54 : vector<4x8x384xbf16> to vector<32x384xbf16>
    %c2_64 = arith.constant 2 : index
    %c0_65 = arith.constant 0 : index
    %c0_66 = arith.constant 0 : index
    %56 = vector.load %arg8[%c2_64, %c0_65, %c0_66] : memref<3x384x128xbf16, #tpu.memory_space<vmem>>, vector<1x384x128xbf16>
    %57 = vector.shape_cast %56 : vector<1x384x128xbf16> to vector<384x128xbf16>
    %cst_67 = arith.constant dense<0.000000e+00> : vector<32x128xf32>
    %58 = tpu.matmul %55, %57, %cst_67 {dimension_numbers = #tpu.dot_dimension_numbers<[1], [0], [0], [1], [0, 0, 1, 1], [], []>} : vector<32x384xbf16>, vector<384x128xbf16>, vector<32x128xf32> -> vector<32x128xf32>
    %59 = arith.addf %50, %58 : vector<32x128xf32>
    %c0_68 = arith.constant 0 : index
    %c0_69 = arith.constant 0 : index
    %60 = vector.load %arg9[%c0_68, %c0_69] : memref<1x128xf32, #tpu.memory_space<vmem>>, vector<1x128xf32>
    %61 = vector.broadcast %60 : vector<1x128xf32> to vector<32x128xf32>
    %62 = arith.addf %59, %61 : vector<32x128xf32>
    %cst_70 = arith.constant 0.000000e+00 : f32
    %63 = vector.broadcast %cst_70 : f32 to vector<32x128xf32>
    %64 = arith.cmpf oge, %62, %63 : vector<32x128xf32>
    %cst_71 = arith.constant 1.000000e-01 : f32
    %65 = vector.broadcast %cst_71 : f32 to vector<32x128xf32>
    %66 = arith.mulf %65, %62 : vector<32x128xf32>
    %67 = arith.select %64, %62, %66 : vector<32x128xi1>, vector<32x128xf32>
    %68 = arith.addf %67, %31 : vector<32x128xf32>
    %c0_72 = arith.constant 0 : index
    %c0_73 = arith.constant 0 : index
    %c0_74 = arith.constant 0 : index
    %c0_75 = arith.constant 0 : index
    %69 = vector.load %arg10[%c0_72, %c0_73, %c0_74, %c0_75] : memref<1x1x32x128xf32, #tpu.memory_space<vmem>>, vector<1x1x32x128xf32>
    %70 = vector.shape_cast %69 : vector<1x1x32x128xf32> to vector<32x128xf32>
    %71 = vector.shape_cast %68 : vector<32x128xf32> to vector<1x1x32x128xf32>
    tpu.vector_store %arg10[%c0_72, %c0_73, %c0_74, %c0_75], %71 {strides = array<i32>} : memref<1x1x32x128xf32, #tpu.memory_space<vmem>>, vector<1x1x32x128xf32>,
    return
  }
  func.func @transform_0(%arg0: i32, %arg1: i32) -> (i32, i32, i32, i32) {
    %c0_i32 = arith.constant 0 : i32
    %c0_i32_0 = arith.constant 0 : i32
    %c0_i32_1 = arith.constant 0 : i32
    return %arg0, %arg1, %c0_i32, %c0_i32_0 : i32, i32, i32, i32
  }
  func.func @transform_1(%arg0: i32, %arg1: i32) -> (i32, i32, i32, i32) {
    %c0_i32 = arith.constant 0 : i32
    %c0_i32_0 = arith.constant 0 : i32
    %c0_i32_1 = arith.constant 0 : i32
    return %arg0, %arg1, %c0_i32, %c0_i32_0 : i32, i32, i32, i32
  }
  func.func @transform_2(%arg0: i32, %arg1: i32) -> (i32, i32) {
    %c0_i32 = arith.constant 0 : i32
    %c0_i32_0 = arith.constant 0 : i32
    %c0_i32_1 = arith.constant 0 : i32
    return %c0_i32, %c0_i32_0 : i32, i32
  }
  func.func @transform_3(%arg0: i32, %arg1: i32) -> (i32, i32) {
    %c0_i32 = arith.constant 0 : i32
    %c0_i32_0 = arith.constant 0 : i32
    %c0_i32_1 = arith.constant 0 : i32
    return %c0_i32, %c0_i32_0 : i32, i32
  }
  func.func @transform_4(%arg0: i32, %arg1: i32) -> (i32, i32) {
    %c0_i32 = arith.constant 0 : i32
    %c0_i32_0 = arith.constant 0 : i32
    %c0_i32_1 = arith.constant 0 : i32
    return %c0_i32, %c0_i32_0 : i32, i32
  }
  func.func @transform_5(%arg0: i32, %arg1: i32) -> (i32, i32) {
    %c0_i32 = arith.constant 0 : i32
    %c0_i32_0 = arith.constant 0 : i32
    %c0_i32_1 = arith.constant 0 : i32
    return %c0_i32, %c0_i32_0 : i32, i32
  }
  func.func @transform_6(%arg0: i32, %arg1: i32) -> (i32, i32, i32) {
    %c0_i32 = arith.constant 0 : i32
    %c0_i32_0 = arith.constant 0 : i32
    %c0_i32_1 = arith.constant 0 : i32
    %c0_i32_2 = arith.constant 0 : i32
    return %c0_i32, %c0_i32_0, %c0_i32_1 : i32, i32, i32
  }
  func.func @transform_7(%arg0: i32, %arg1: i32) -> (i32, i32) {
    %c0_i32 = arith.constant 0 : i32
    %c0_i32_0 = arith.constant 0 : i32
    %c0_i32_1 = arith.constant 0 : i32
    return %c0_i32, %c0_i32_0 : i32, i32
  }
  func.func @transform_8(%arg0: i32, %arg1: i32) -> (i32, i32, i32, i32) {
    %c0_i32 = arith.constant 0 : i32
    %c0_i32_0 = arith.constant 0 : i32
    %c0_i32_1 = arith.constant 0 : i32
    return %arg0, %arg1, %c0_i32, %c0_i32_0 : i32, i32, i32, i32
  }
}

</mosaic_0001>

<llo_original>
// kernel: tpu_custom_call.1
$region0: #{tpu_custom_call.1}
  #allocation0 [shape = 'u32[]', space=smem, size = 0x4, offset = 0x4, fixed_abs, tag = 'smem constant byte address 0x4 - core index']
  #allocation1 [shape = 'u32[144,128]{1,0:T(1,128)}', space=vmem, size = 0x12000, scoped, tag = 'internal scratch']
  #allocation2 [shape = 'bf16[6,16,128]{2,1,0:T(16,128)(2,1)}', space=vmem, size = 0x6000, scoped, tag = 'scratch operand']
  %s0 = inlined_call_operand.vmem [shape: bf16[2,2,48,36], index: 0, kind: input, shape index: {}]
  %s1 = inlined_call_operand.vmem [shape: f32[2,2,32,4], index: 1, kind: input, shape index: {}]
  %s2 = inlined_call_operand.vmem [shape: bf16[36,128], index: 2, kind: input, shape index: {}]
  %s3 = inlined_call_operand.vmem [shape: f32[4,128], index: 3, kind: input, shape index: {}]
  %s4 = inlined_call_operand.vmem [shape: f32[1,128], index: 4, kind: input, shape index: {}]
  %s5 = inlined_call_operand.vmem [shape: f32[1,128], index: 5, kind: input, shape index: {}]
  %s6 = inlined_call_operand.hbm [shape: bf16[3,384,128], index: 6, kind: input, shape index: {}]
  %s7 = inlined_call_operand.vmem [shape: f32[1,128], index: 7, kind: input, shape index: {}]
  %s8 = inlined_call_operand.hbm [shape: f32[2,2,32,128], index: 8, kind: output, shape index: {}]
  %s9 = sld [smem:[#allocation0]]
  $region77: #{tpu_custom_call.1} parent=0
    _
  %s11 = ssub.s32 1, %s9
  %s12 = scalar_select 0, %s11, %s9
  $region1: #{tpu_custom_call.1} parent=0
    #allocation3 [shape = 'u8[294912]{0}', space=vmem, size = 0x48000, scoped, tag = 'input window, operand 6, single buffered']
    #allocation4 [shape = 's32[2]{0}', space=sflag, size = 0x8, scoped, tag = 'scoped memory for tpu_custom_call.1']
    #allocation5 [shape = 's32[2]{0}', space=sflag, size = 0x8, scoped, tag = 'scoped memory for tpu_custom_call.1']
    #allocation6 [shape = 'u8[32768]{0}', space=vmem, size = 0x8000, scoped, tag = 'output window, operand 0']
    %13 = vsyncpa [#allocation4], 0
    %14 = vsyncpa [#allocation5], 0
    %s15 = scalar_lea.sflag [#allocation5], 1
    %16 = vsyncpa %s15, 0
    loop: start=0, step=1, limit=6
    $region2: #{tpu_custom_call.1} parent=1 // loop_pre_header
      _
    $region3: #{tpu_custom_call.1} parent=1 // loop_header
      %s18 = sphi 0, %s22
      %p19 = scmp.ge.s32.totalorder %s18, 6
      %s25 = sphi 0, %s37
      %s26 = sphi 0, %s33
      %s27 = sphi 0, %s25
      %s28 = sphi 0, %s26
      %s29 = sphi 0, %s27
      %s30 = sphi 0, %s28
      %s42 = sphi 0, %s44
      %s45 = sphi 0, %s42
      %s46 = sphi 0, %s45
      %s62 = sphi 0, %s46
      %s70 = sphi 0, %s72
      %s73 = sphi 0, %s70
      %s74 = sphi 0, %s73
      %s90 = sphi 0, %s74
      %s94 = sphi 0, %s94
      %s96 = sphi 0, %s94
      %s97 = sphi 0, %s96
      %s111 = sphi 0, %s97
      %s115 = sphi 0, %s115
      %s117 = sphi 0, %s115
      %s118 = sphi 0, %s117
      %s132 = sphi 0, %s118
      %s136 = sphi 0, %s136
      %s138 = sphi 0, %s136
      %s139 = sphi 0, %s138
      %s153 = sphi 0, %s139
      %s157 = sphi 0, %s157
      %s159 = sphi 0, %s157
      %s160 = sphi 0, %s159
      %s174 = sphi 0, %s160
      %s178 = sphi 0, %s178
      %s180 = sphi 0, %s178
      %s181 = sphi 0, %s180
      %s195 = sphi 0, %s181
      %s199 = sphi 0, %s199
      %s201 = sphi 0, %s199
      %s202 = sphi 0, %s201
      %s216 = sphi 0, %s202
      %s224 = sphi 0, %s226
      %s227 = sphi 0, %s224
      %s228 = sphi 0, %s227
      %s244 = sphi 0, %s228
    $region4: #{tpu_custom_call.1} parent=1 // loop_header_branch
      %21 = sbr.rel (%p19) target = $region8
    $region5: #{tpu_custom_call.1} parent=1 // loop_body
      %s23 = ssub.s32 %s18, 1
      %s24 = ssub.s32 %s18, 2
      %s31 = sadd.s32 1, %s26
      %p32 = scmp.ge.s32.totalorder %s31, 2
      %s33 = scalar_select %p32, 0, %s31
      %s34 = sadd.s32 1, %s25
      %s35 = scalar_select %p32, %s34, %s25
      %p36 = scmp.ge.s32.totalorder %s35, 2
      %s37 = scalar_select %p36, 0, %s35
      %s38 = ssub.s32 %s25, %s37
      %s39 = ssub.s32 %s26, %s33
      %s40 = sor.u32 %s38, %s39
      %p41 = scmp.eq.s32.totalorder %s40, 0
      %s43 = sadd.s32 %s42, 1
      %s44 = scalar_select %p41, %s42, %s43
      %p47 = pneg %p41
      %p48 = scmp.eq.s32.totalorder %s18, 3
      %p49 = por %p47, %p48
      %p50 = scmp.ne.s32.totalorder %s42, %s45
      %p51 = scmp.eq.s32.totalorder %s18, 0
      %p52 = por %p50, %p51
      %p53 = scmp.ne.s32.totalorder %s42, %s45
      %p54 = scmp.eq.s32.totalorder %s23, 3
      %p55 = por %p53, %p54
      %p56 = scmp.ne.s32.totalorder %s45, %s46
      %p57 = scmp.eq.s32.totalorder %s23, 0
      %p58 = por %p56, %p57
      %p59 = scmp.ne.s32.totalorder %s45, %s46
      %p60 = scmp.eq.s32.totalorder %s24, 3
      %p61 = por %p59, %p60
      %p63 = scmp.ne.s32.totalorder %s46, %s62
      %p64 = scmp.eq.s32.totalorder %s24, 0
      %p65 = por %p63, %p64
      %s66 = ssub.s32 %s25, %s37
      %s67 = ssub.s32 %s26, %s33
      %s68 = sor.u32 %s66, %s67
      %p69 = scmp.eq.s32.totalorder %s68, 0
      %s71 = sadd.s32 %s70, 1
      %s72 = scalar_select %p69, %s70, %s71
      %p75 = pneg %p69
      %p76 = scmp.eq.s32.totalorder %s18, 3
      %p77 = por %p75, %p76
      %p78 = scmp.ne.s32.totalorder %s70, %s73
      %p79 = scmp.eq.s32.totalorder %s18, 0
      %p80 = por %p78, %p79
      %p81 = scmp.ne.s32.totalorder %s70, %s73
      %p82 = scmp.eq.s32.totalorder %s23, 3
      %p83 = por %p81, %p82
      %p84 = scmp.ne.s32.totalorder %s73, %s74
      %p85 = scmp.eq.s32.totalorder %s23, 0
      %p86 = por %p84, %p85
      %p87 = scmp.ne.s32.totalorder %s73, %s74
      %p88 = scmp.eq.s32.totalorder %s24, 3
      %p89 = por %p87, %p88
      %p91 = scmp.ne.s32.totalorder %s74, %s90
      %p92 = scmp.eq.s32.totalorder %s24, 0
      %p93 = por %p91, %p92
      %s95 = sadd.s32 %s94, 1
      %p98 = scmp.eq.s32.totalorder %s18, 3
      %p99 = scmp.ne.s32.totalorder %s94, %s96
      %p100 = scmp.eq.s32.totalorder %s18, 0
      %p101 = por %p99, %p100
      %p102 = scmp.ne.s32.totalorder %s94, %s96
      %p103 = scmp.eq.s32.totalorder %s23, 3
      %p104 = por %p102, %p103
      %p105 = scmp.ne.s32.totalorder %s96, %s97
      %p106 = scmp.eq.s32.totalorder %s23, 0
      %p107 = por %p105, %p106
      %p108 = scmp.ne.s32.totalorder %s96, %s97
      %p109 = scmp.eq.s32.totalorder %s24, 3
      %p110 = por %p108, %p109
      %p112 = scmp.ne.s32.totalorder %s97, %s111
      %p113 = scmp.eq.s32.totalorder %s24, 0
      %p114 = por %p112, %p113
      %s116 = sadd.s32 %s115, 1
      %p119 = scmp.eq.s32.totalorder %s18, 3
      %p120 = scmp.ne.s32.totalorder %s115, %s117
      %p121 = scmp.eq.s32.totalorder %s18, 0
      %p122 = por %p120, %p121
      %p123 = scmp.ne.s32.totalorder %s115, %s117
      %p124 = scmp.eq.s32.totalorder %s23, 3
      %p125 = por %p123, %p124
      %p126 = scmp.ne.s32.totalorder %s117, %s118
      %p127 = scmp.eq.s32.totalorder %s23, 0
      %p128 = por %p126, %p127
      %p129 = scmp.ne.s32.totalorder %s117, %s118
      %p130 = scmp.eq.s32.totalorder %s24, 3
      %p131 = por %p129, %p130
      %p133 = scmp.ne.s32.totalorder %s118, %s132
      %p134 = scmp.eq.s32.totalorder %s24, 0
      %p135 = por %p133, %p134
      %s137 = sadd.s32 %s136, 1
      %p140 = scmp.eq.s32.totalorder %s18, 3
      %p141 = scmp.ne.s32.totalorder %s136, %s138
      %p142 = scmp.eq.s32.totalorder %s18, 0
      %p143 = por %p141, %p142
      %p144 = scmp.ne.s32.totalorder %s136, %s138
      %p145 = scmp.eq.s32.totalorder %s23, 3
      %p146 = por %p144, %p145
      %p147 = scmp.ne.s32.totalorder %s138, %s139
      %p148 = scmp.eq.s32.totalorder %s23, 0
      %p149 = por %p147, %p148
      %p150 = scmp.ne.s32.totalorder %s138, %s139
      %p151 = scmp.eq.s32.totalorder %s24, 3
      %p152 = por %p150, %p151
      %p154 = scmp.ne.s32.totalorder %s139, %s153
      %p155 = scmp.eq.s32.totalorder %s24, 0
      %p156 = por %p154, %p155
      %s158 = sadd.s32 %s157, 1
      %p161 = scmp.eq.s32.totalorder %s18, 3
      %p162 = scmp.ne.s32.totalorder %s157, %s159
      %p163 = scmp.eq.s32.totalorder %s18, 0
      %p164 = por %p162, %p163
      %p165 = scmp.ne.s32.totalorder %s157, %s159
      %p166 = scmp.eq.s32.totalorder %s23, 3
      %p167 = por %p165, %p166
      %p168 = scmp.ne.s32.totalorder %s159, %s160
      %p169 = scmp.eq.s32.totalorder %s23, 0
      %p170 = por %p168, %p169
      %p171 = scmp.ne.s32.totalorder %s159, %s160
      %p172 = scmp.eq.s32.totalorder %s24, 3
      %p173 = por %p171, %p172
      %p175 = scmp.ne.s32.totalorder %s160, %s174
      %p176 = scmp.eq.s32.totalorder %s24, 0
      %p177 = por %p175, %p176
      %s179 = sadd.s32 %s178, 1
      %p182 = scmp.eq.s32.totalorder %s18, 3
      %p183 = scmp.ne.s32.totalorder %s178, %s180
      %p184 = scmp.eq.s32.totalorder %s18, 0
      %p185 = por %p183, %p184
      %p186 = scmp.ne.s32.totalorder %s178, %s180
      %p187 = scmp.eq.s32.totalorder %s23, 3
      %p188 = por %p186, %p187
      %p189 = scmp.ne.s32.totalorder %s180, %s181
      %p190 = scmp.eq.s32.totalorder %s23, 0
      %p191 = por %p189, %p190
      %p192 = scmp.ne.s32.totalorder %s180, %s181
      %p193 = scmp.eq.s32.totalorder %s24, 3
      %p194 = por %p192, %p193
      %p196 = scmp.ne.s32.totalorder %s181, %s195
      %p197 = scmp.eq.s32.totalorder %s24, 0
      %p198 = por %p196, %p197
      %s200 = sadd.s32 %s199, 1
      %p203 = scmp.eq.s32.totalorder %s18, 3
      %p204 = scmp.ne.s32.totalorder %s199, %s201
      %p205 = scmp.eq.s32.totalorder %s18, 0
      %p206 = por %p204, %p205
      %p207 = scmp.ne.s32.totalorder %s199, %s201
      %p208 = scmp.eq.s32.totalorder %s23, 3
      %p209 = por %p207, %p208
      %p210 = scmp.ne.s32.totalorder %s201, %s202
      %p211 = scmp.eq.s32.totalorder %s23, 0
      %p212 = por %p210, %p211
      %p213 = scmp.ne.s32.totalorder %s201, %s202
      %p214 = scmp.eq.s32.totalorder %s24, 3
      %p215 = por %p213, %p214
      %p217 = scmp.ne.s32.totalorder %s202, %s216
      %p218 = scmp.eq.s32.totalorder %s24, 0
      %p219 = por %p217, %p218
      %s220 = ssub.s32 %s25, %s37
      %s221 = ssub.s32 %s26, %s33
      %s222 = sor.u32 %s220, %s221
      %p223 = scmp.eq.s32.totalorder %s222, 0
      %s225 = sadd.s32 %s224, 1
      %s226 = scalar_select %p223, %s224, %s225
      %p229 = pneg %p223
      %p230 = scmp.eq.s32.totalorder %s18, 3
      %p231 = por %p229, %p230
      %p232 = scmp.ne.s32.totalorder %s224, %s227
      %p233 = scmp.eq.s32.totalorder %s18, 0
      %p234 = por %p232, %p233
      %p235 = scmp.ne.s32.totalorder %s224, %s227
      %p236 = scmp.eq.s32.totalorder %s23, 3
      %p237 = por %p235, %p236
      %p238 = scmp.ne.s32.totalorder %s227, %s228
      %p239 = scmp.eq.s32.totalorder %s23, 0
      %p240 = por %p238, %p239
      %p241 = scmp.ne.s32.totalorder %s227, %s228
      %p242 = scmp.eq.s32.totalorder %s24, 3
      %p243 = por %p241, %p242
      %p245 = scmp.ne.s32.totalorder %s228, %s244
      %p246 = scmp.eq.s32.totalorder %s24, 0
      %p247 = por %p245, %p246
      %p248 = scmp.le.s32.totalorder 1, %s18
      %p249 = scmp.lt.s32.totalorder %s18, 5
      %p250 = pnand %p248, %p249
      %p251 = pneg %p250
      // Predicated region
      $region9: #{tpu_custom_call.1} parent=5 // pred_check
        _
      $region10: #{tpu_custom_call.1} parent=5 // pred_check_branch
        %253 = sbr.rel (%p250) target = $region12
      $region11: #{tpu_custom_call.1} parent=5 // pred_region
        %s254 = ssub.s32 %s18, 1
        // Predicated region
        $region13: #{tpu_custom_call.1} parent=11 // pred_check
          %p255 = pneg %p107
        $region14: #{tpu_custom_call.1} parent=11 // pred_check_branch
          %257 = sbr.rel (%p255) target = $region16
        $region15: #{tpu_custom_call.1} parent=11 // pred_region
          _
        $region16: #{tpu_custom_call.1} parent=11 // pred_fallthru
          _
        // Predicated region
        $region17: #{tpu_custom_call.1} parent=11 // pred_check
          %p258 = pneg %p128
        $region18: #{tpu_custom_call.1} parent=11 // pred_check_branch
          %260 = sbr.rel (%p258) target = $region20
        $region19: #{tpu_custom_call.1} parent=11 // pred_region
          _
        $region20: #{tpu_custom_call.1} parent=11 // pred_fallthru
          _
        // Predicated region
        $region21: #{tpu_custom_call.1} parent=11 // pred_check
          %p261 = pneg %p149
        $region22: #{tpu_custom_call.1} parent=11 // pred_check_branch
          %263 = sbr.rel (%p261) target = $region24
        $region23: #{tpu_custom_call.1} parent=11 // pred_region
          _
        $region24: #{tpu_custom_call.1} parent=11 // pred_fallthru
          _
        // Predicated region
        $region25: #{tpu_custom_call.1} parent=11 // pred_check
          %p264 = pneg %p170
        $region26: #{tpu_custom_call.1} parent=11 // pred_check_branch
          %266 = sbr.rel (%p264) target = $region28
        $region27: #{tpu_custom_call.1} parent=11 // pred_region
          _
        $region28: #{tpu_custom_call.1} parent=11 // pred_fallthru
          _
        // Predicated region
        $region29: #{tpu_custom_call.1} parent=11 // pred_check
          %p267 = pneg %p191
        $region30: #{tpu_custom_call.1} parent=11 // pred_check_branch
          %269 = sbr.rel (%p267) target = $region32
        $region31: #{tpu_custom_call.1} parent=11 // pred_region
          %s271 = ssub.s32 9216, 9216
          %272 = vsyncadd [#allocation4], %s271
          %s273 = sshll.u32 [#allocation3], 4
          %s274 = int_to_ptr.vmem [resolvable:$true] %s273
          %279 = dma.hbm_to_vmem [thread:$0]  %s6, 9216, %s274, [#allocation4], 64, 64, 4
        $region32: #{tpu_custom_call.1} parent=11 // pred_fallthru
          _
        // Predicated region
        $region33: #{tpu_custom_call.1} parent=11 // pred_check
          %p280 = pneg %p212
        $region34: #{tpu_custom_call.1} parent=11 // pred_check_branch
          %282 = sbr.rel (%p280) target = $region36
        $region35: #{tpu_custom_call.1} parent=11 // pred_region
          _
        $region36: #{tpu_custom_call.1} parent=11 // pred_fallthru
          _
      $region12: #{tpu_custom_call.1} parent=5 // pred_fallthru
        _
      %p283 = scmp.lt.s32.totalorder %s18, 4
      // Predicated region
      $region37: #{tpu_custom_call.1} parent=5 // pred_check
        %p284 = pneg %p283
      $region38: #{tpu_custom_call.1} parent=5 // pred_check_branch
        %286 = sbr.rel (%p284) target = $region40
      $region39: #{tpu_custom_call.1} parent=5 // pred_region
        // Predicated region
        $region41: #{tpu_custom_call.1} parent=39 // pred_check
          %p287 = pneg %p52
        $region42: #{tpu_custom_call.1} parent=39 // pred_check_branch
          %289 = sbr.rel (%p287) target = $region44
        $region43: #{tpu_custom_call.1} parent=39 // pred_region
          %p290 = scmp.lt.s32.totalorder %s25, 1
          %s291 = scalar_select %p290, %s25, 1
          %p292 = scmp.lt.s32.totalorder %s26, 1
          %s293 = scalar_select %p292, %s26, 1
          %s294 = smul.addr %s293, 6
          %s295 = smul.addr %s291, 12
          %s296 = sadd.s32 %s294, %s295
          %s297 = smul.addr %s296, 4
          %s298 = scalar_lea.vmem %s0, %s297
        $region44: #{tpu_custom_call.1} parent=39 // pred_fallthru
          _
        // Predicated region
        $region45: #{tpu_custom_call.1} parent=39 // pred_check
          %p299 = pneg %p80
        $region46: #{tpu_custom_call.1} parent=39 // pred_check_branch
          %301 = sbr.rel (%p299) target = $region48
        $region47: #{tpu_custom_call.1} parent=39 // pred_region
          %p302 = scmp.lt.s32.totalorder %s25, 1
          %s303 = scalar_select %p302, %s25, 1
          %p304 = scmp.lt.s32.totalorder %s26, 1
          %s305 = scalar_select %p304, %s26, 1
          %s306 = smul.addr %s305, 4
          %s307 = smul.addr %s303, 8
          %s308 = sadd.s32 %s306, %s307
          %s309 = smul.addr %s308, 8
          %s310 = scalar_lea.vmem %s1, %s309
        $region48: #{tpu_custom_call.1} parent=39 // pred_fallthru
          _
      $region40: #{tpu_custom_call.1} parent=5 // pred_fallthru
        _
      %p311 = scmp.le.s32.totalorder 1, %s18
      %p312 = scmp.lt.s32.totalorder %s18, 5
      %p313 = pnand %p311, %p312
      %p314 = pneg %p313
      // Predicated region
      $region49: #{tpu_custom_call.1} parent=5 // pred_check
        _
      $region50: #{tpu_custom_call.1} parent=5 // pred_check_branch
        %316 = sbr.rel (%p313) target = $region52
      $region51: #{tpu_custom_call.1} parent=5 // pred_region
        %s317 = ssub.s32 %s18, 1
        // Predicated region
        $region53: #{tpu_custom_call.1} parent=51 // pred_check
          %p318 = pneg %p191
        $region54: #{tpu_custom_call.1} parent=51 // pred_check_branch
          %320 = sbr.rel (%p318) target = $region56
        $region55: #{tpu_custom_call.1} parent=51 // pred_region
          %321 = dma.done [#allocation4], 9216
        $region56: #{tpu_custom_call.1} parent=51 // pred_fallthru
          _
        %p322 = scmp.lt.s32.totalorder %s27, 1
        %s323 = scalar_select %p322, %s27, 1
        %p324 = scmp.lt.s32.totalorder %s28, 1
        %s325 = scalar_select %p324, %s28, 1
        %s326 = smul.addr %s325, 6
        %s327 = smul.addr %s323, 12
        %s328 = sadd.s32 %s326, %s327
        %s329 = smul.addr %s328, 4
        %s330 = scalar_lea.vmem %s0, %s329
        %p331 = pneg %p58
        %p332 = pneg %p55
        %p333 = scmp.lt.s32.totalorder %s27, 1
        %s334 = scalar_select %p333, %s27, 1
        %p335 = scmp.lt.s32.totalorder %s28, 1
        %s336 = scalar_select %p335, %s28, 1
        %s337 = smul.addr %s336, 4
        %s338 = smul.addr %s334, 8
        %s339 = sadd.s32 %s337, %s338
        %s340 = smul.addr %s339, 8
        %s341 = scalar_lea.vmem %s1, %s340
        %p342 = pneg %p86
        %p343 = pneg %p83
        %p344 = pneg %p107
        %p345 = pneg %p104
        %p346 = pneg %p128
        %p347 = pneg %p125
        %p348 = pneg %p149
        %p349 = pneg %p146
        %p350 = pneg %p170
        %p351 = pneg %p167
        %p352 = pneg %p191
        %p353 = pneg %p188
        %p354 = pneg %p212
        %p355 = pneg %p209
        %p356 = pneg %p240
        %p357 = pneg %p237
        %s358 = sand.u32 %s227, 1
        %s359 = scalar_lea.sflag [#allocation5], %s358
        %s360 = sand.u32 %s227, 1
        %s361 = smul.addr %s360, 32
        %s362 = scalar_lea.vmem [#allocation6], %s361
        %p363 = scmp.lt.s32.totalorder %s27, 1
        %s364 = scalar_select %p363, %s27, 1
        %p365 = scmp.lt.s32.totalorder %s28, 1
        %s366 = scalar_select %p365, %s28, 1
        %s367 = smul.addr %s366, 6
        %s368 = smul.addr %s364, 12
        %s369 = sadd.s32 %s367, %s368
        %s370 = smul.addr %s369, 4
        %s371 = scalar_lea.vmem %s0, %s370
        %p372 = scmp.lt.s32.totalorder %s27, 1
        %s373 = scalar_select %p372, %s27, 1
        %p374 = scmp.lt.s32.totalorder %s28, 1
        %s375 = scalar_select %p374, %s28, 1
        %s376 = smul.addr %s375, 4
        %s377 = smul.addr %s373, 8
        %s378 = sadd.s32 %s376, %s377
        %s379 = smul.addr %s378, 8
        %s380 = scalar_lea.vmem %s1, %s379
        %v382 = vld [vmem:[%s371] sm:$0xf]
        %v383 = vld [vmem:[%s371 + $0x4] sm:$0xf]
        %v384 = vld [vmem:[%s371 + $0x8] sm:$0xf]
        %v385 = vld [vmem:[%s371 + $0xc] sm:$0xf]
        %v386 = vld [vmem:[%s371 + $0x10] sm:$0xf]
        %v387 = vld [vmem:[%s371 + $0x14] sm:$0xf]
        %v388 = vld [vmem:[%s2] sm:$0xf]
        %v389 = vld [vmem:[%s2 + $0x4] sm:$0xf]
        %v390 = vld [vmem:[%s2 + $0x8] sm:$0xf]
        %v391 = vld [vmem:[%s2 + $0xc] sm:$0xf]
        %v392 = vld [vmem:[%s2 + $0x10] sm:$0x3]
        %v393 = vld [vmem:[%s4] sm:$0x1]
        %v395 = vlaneseq
        %v396 = vshrl.u32 %v395, 7
        %v397 = vsub.s32 0, %v396
        %v398 = vrot.slane %v393, %v397
        %v406 = vunpack.c.l.b16 %v382
        %v407 = vunpack.c.l.b16 %v383
        %v408 = vunpack.c.l.b16 %v384
        %v409 = vunpack.c.l.b16 %v385
        %v410 = vunpack.c.l.b16 %v386
        %v411 = vunpack.c.l.b16 %v387
        %v412 = vpack.c.b16 %v407, %v406
        %v413 = vpack.c.b16 %v409, %v408
        %v414 = vpack.c.b16 %v411, %v410
        %v420 = vunpack.c.l.b16 %v388
        %v421 = vunpack.c.l.b16 %v389
        %v422 = vunpack.c.l.b16 %v390
        %v423 = vunpack.c.l.b16 %v391
        %v424 = vunpack.c.l.b16 %v392
        %v425 = vpack.c.b16 %v421, %v420
        %v426 = vpack.c.b16 %v423, %v422
        %v427 = vpack.c.b16 %v424, %v424
        %vm430 = vcmask 293888
        %v432 = vsel %vm430, %v412, 0
        %v435 = vsel %vm430, %v413, 0
        %v438 = vsel %vm430, %v414, 0
        %vm440 = vcmask 1041408
        %v442 = vsel %vm440, %v427, 0
        %444 = vmatprep.subr.bf16.mxu0 0
        %445 = vmatpush1.bf16.msra.mxu0 %v425
        %446 = vmatprep.subr.bf16.mxu0 0
        %447 = vmatpush1.bf16.msra.mxu0 %v426
        %448 = vmatprep.subr.bf16.mxu0 0
        %449 = vmatpush1.bf16.msra.mxu0 %v442
        %450 = vmatprep.subr.bf16.mxu0 0
        %451 = vmatpush1.bf16.msra.mxu0 0
        %452 = vmatprep.subr.bf16.mxu0 0
        %453 = vmatpush1.bf16.msra.mxu0 0
        %454 = vmatprep.subr.bf16.mxu0 0
        %455 = vmatpush1.bf16.msra.mxu0 0
        %456 = vmatprep.subr.bf16.mxu0 0
        %457 = vmatpush1.bf16.msra.mxu0 0
        %458 = vmatprep.subr.bf16.mxu0 0
        %459 = vmatpush1.bf16.msra.mxu0 0
        %460 = vmatprep.subr.bf16.mxu0 0
        %461 = vmatpush1.bf16.msra.mxu0 0
        %462 = vmatprep.subr.bf16.mxu0 0
        %463 = vmatpush1.bf16.msra.mxu0 0
        %464 = vmatprep.subr.bf16.mxu0 0
        %465 = vmatpush1.bf16.msra.mxu0 0
        %466 = vmatprep.subr.bf16.mxu0 0
        %467 = vmatpush1.bf16.msra.mxu0 0
        %468 = vmatprep.subr.bf16.mxu0 0
        %469 = vmatpush1.bf16.msra.mxu0 0
        %470 = vmatprep.subr.bf16.mxu0 0
        %471 = vmatpush1.bf16.msra.mxu0 0
        %472 = vmatprep.subr.bf16.mxu0 0
        %473 = vmatpush1.bf16.msra.mxu0 0
        %474 = vmatprep.subr.bf16.mxu0 0
        %475 = vmatpush1.bf16.msra.mxu0 0
        %476 = vmatprep.mubr.bf16.mxu0 0
        %477 = vmatmul.mubr.bf16.gmra.mrb[0].mxu0 %v432
        %v478 = vpop.f32.mrb[0].mxu0
        %v479 = vadd.f32 %v398, %v478
        %v480 = vpop.f32.mrb[0].mxu0
        %v481 = vpop.f32.mrb[0].mxu0
        %v482 = vadd.f32 %v398, %v481
        %v483 = vpop.f32.mrb[0].mxu0
        %484 = vmatprep.mubr.bf16.mxu0 0
        %485 = vmatmul.mubr.bf16.gmra.mrb[0].mxu0 %v435
        %v486 = vpop.f32.mrb[0].mxu0
        %v487 = vadd.f32 %v398, %v486
        %v488 = vpop.f32.mrb[0].mxu0
        %v489 = vpop.f32.mrb[0].mxu0
        %v490 = vadd.f32 %v398, %v489
        %v491 = vpop.f32.mrb[0].mxu0
        %492 = vmatprep.mubr.bf16.mxu0 0
        %493 = vmatmul.mubr.bf16.gmra.mrb[0].mxu0 %v438
        %v494 = vpop.f32.mrb[0].mxu0
        %v495 = vadd.f32 %v398, %v494
        %v496 = vpop.f32.mrb[0].mxu0
        %v497 = vpop.f32.mrb[0].mxu0
        %v498 = vadd.f32 %v398, %v497
        %v499 = vpop.f32.mrb[0].mxu0
        %500 = vdwg.mxu0
        %vm501 = vcmp.ge.f32.partialorder %v479, 0.0
        %vm502 = vcmp.ge.f32.partialorder %v482, 0.0
        %vm503 = vcmp.ge.f32.partialorder %v487, 0.0
        %vm504 = vcmp.ge.f32.partialorder %v490, 0.0
        %vm505 = vcmp.ge.f32.partialorder %v495, 0.0
        %vm506 = vcmp.ge.f32.partialorder %v498, 0.0
        %v507 = vmul.f32 %v479, 0.01
        %v508 = vmul.f32 %v482, 0.01
        %v509 = vmul.f32 %v487, 0.01
        %v510 = vmul.f32 %v490, 0.01
        %v511 = vmul.f32 %v495, 0.01
        %v512 = vmul.f32 %v498, 0.01
        %v513 = vsel %vm501, %v479, %v507
        %v514 = vsel %vm502, %v482, %v508
        %v515 = vsel %vm503, %v487, %v509
        %v516 = vsel %vm504, %v490, %v510
        %v517 = vsel %vm505, %v495, %v511
        %v518 = vsel %vm506, %v498, %v512
        %v519 = vpack.c.bf16 %v513, %v513
        %v520 = vpack.c.bf16 %v514, %v514
        %v521 = vpack.c.bf16 %v515, %v515
        %v522 = vpack.c.bf16 %v516, %v516
        %v523 = vpack.c.bf16 %v517, %v517
        %v524 = vpack.c.bf16 %v518, %v518
        %v526 = vshrl.u32 %v519, 16
        %v528 = vrot.slane %v526, 7
        %v529 = vshll.u32 %v519, 16
        %v531 = vor.u32 %v528, %v529
        %v533 = vshrl.u32 %v520, 16
        %v535 = vrot.slane %v533, 7
        %v536 = vshll.u32 %v520, 16
        %v538 = vor.u32 %v535, %v536
        %v540 = vshrl.u32 %v521, 16
        %v542 = vrot.slane %v540, 7
        %v543 = vshll.u32 %v521, 16
        %v545 = vor.u32 %v542, %v543
        %v547 = vshrl.u32 %v522, 16
        %v549 = vrot.slane %v547, 7
        %v550 = vshll.u32 %v522, 16
        %v552 = vor.u32 %v549, %v550
        %v554 = vshrl.u32 %v523, 16
        %v556 = vrot.slane %v554, 7
        %v557 = vshll.u32 %v523, 16
        %v559 = vor.u32 %v556, %v557
        %v561 = vshrl.u32 %v524, 16
        %v563 = vrot.slane %v561, 7
        %v564 = vshll.u32 %v524, 16
        %v566 = vor.u32 %v563, %v564
        %vm573 = vcmask 1044480
        %vm574 = vsmask.f32 4354
        %vm575 = vmand %vm573, %vm574
        %v576 = vld [vmem:[#allocation2] sm:$0x1f]
        %v577 = vsel %vm575, %v531, %v576
        %578 = vst [vmem:[#allocation2] sm:$0x1f] %v577
        %v579 = vld [vmem:[#allocation2 + $0x8] sm:$0x1f]
        %v580 = vsel %vm575, %v538, %v579
        %581 = vst [vmem:[#allocation2 + $0x8] sm:$0x1f] %v580
        %v582 = vld [vmem:[#allocation2 + $0x10] sm:$0x1f]
        %v583 = vsel %vm575, %v545, %v582
        %584 = vst [vmem:[#allocation2 + $0x10] sm:$0x1f] %v583
        %v585 = vld [vmem:[#allocation2 + $0x18] sm:$0x1f]
        %v586 = vsel %vm575, %v552, %v585
        %587 = vst [vmem:[#allocation2 + $0x18] sm:$0x1f] %v586
        %v588 = vld [vmem:[#allocation2 + $0x20] sm:$0x1f]
        %v589 = vsel %vm575, %v559, %v588
        %590 = vst [vmem:[#allocation2 + $0x20] sm:$0x1f] %v589
        %v591 = vld [vmem:[#allocation2 + $0x28] sm:$0x1f]
        %v592 = vsel %vm575, %v566, %v591
        %593 = vst [vmem:[#allocation2 + $0x28] sm:$0x1f] %v592
        %vm594 = vcmask 1040384
        %vm595 = vsmask.f32 256
        %vm596 = vmand %vm594, %vm595
        %v597 = vld [vmem:[#allocation2] sm:$0x1]
        %v598 = vsel %vm596, 0, %v597
        %599 = vst [vmem:[#allocation2] sm:$0x1] %v598
        %v600 = vld [vmem:[#allocation2 + $0x8] sm:$0x1]
        %v601 = vsel %vm596, 0, %v600
        %602 = vst [vmem:[#allocation2 + $0x8] sm:$0x1] %v601
        %v603 = vld [vmem:[#allocation2 + $0x10] sm:$0x1]
        %v604 = vsel %vm596, 0, %v603
        %605 = vst [vmem:[#allocation2 + $0x10] sm:$0x1] %v604
        %v606 = vld [vmem:[#allocation2 + $0x18] sm:$0x1]
        %v607 = vsel %vm596, 0, %v606
        %608 = vst [vmem:[#allocation2 + $0x18] sm:$0x1] %v607
        %v609 = vld [vmem:[#allocation2 + $0x20] sm:$0x1]
        %v610 = vsel %vm596, 0, %v609
        %611 = vst [vmem:[#allocation2 + $0x20] sm:$0x1] %v610
        %v612 = vld [vmem:[#allocation2 + $0x28] sm:$0x1]
        %v613 = vsel %vm596, 0, %v612
        %614 = vst [vmem:[#allocation2 + $0x28] sm:$0x1] %v613
        %vm615 = vcmask 1047556
        %vm616 = vsmask.f32 7954
        %vm617 = vmand %vm615, %vm616
        %v618 = vld [vmem:[#allocation2] sm:$0xf0]
        %v619 = vsel %vm617, 0, %v618
        %620 = vst [vmem:[#allocation2] sm:$0xf0] %v619
        %v621 = vld [vmem:[#allocation2 + $0x8] sm:$0xf0]
        %v622 = vsel %vm617, 0, %v621
        %623 = vst [vmem:[#allocation2 + $0x8] sm:$0xf0] %v622
        %v624 = vld [vmem:[#allocation2 + $0x10] sm:$0xf0]
        %v625 = vsel %vm617, 0, %v624
        %626 = vst [vmem:[#allocation2 + $0x10] sm:$0xf0] %v625
        %v627 = vld [vmem:[#allocation2 + $0x18] sm:$0xf0]
        %v628 = vsel %vm617, 0, %v627
        %629 = vst [vmem:[#allocation2 + $0x18] sm:$0xf0] %v628
        %v630 = vld [vmem:[#allocation2 + $0x20] sm:$0xf0]
        %v631 = vsel %vm617, 0, %v630
        %632 = vst [vmem:[#allocation2 + $0x20] sm:$0xf0] %v631
        %v633 = vld [vmem:[#allocation2 + $0x28] sm:$0xf0]
        %v634 = vsel %vm617, 0, %v633
        %635 = vst [vmem:[#allocation2 + $0x28] sm:$0xf0] %v634
        %p636 = scmp.eq.s32.totalorder %s28, 0
        // Predicated region
        $region57: #{tpu_custom_call.1} parent=51 // pred_check
          %p637 = pneg %p636
        $region58: #{tpu_custom_call.1} parent=51 // pred_check_branch
          %639 = sbr.rel (%p637) target = $region60
        $region59: #{tpu_custom_call.1} parent=51 // pred_region
          %640 = vst [vmem:[#allocation2] sm:$0xff] 0
        $region60: #{tpu_custom_call.1} parent=51 // pred_fallthru
          _
        %p641 = scmp.eq.s32.totalorder %s28, 1
        // Predicated region
        $region61: #{tpu_custom_call.1} parent=51 // pred_check
          %p642 = pneg %p641
        $region62: #{tpu_custom_call.1} parent=51 // pred_check_branch
          %644 = sbr.rel (%p642) target = $region64
        $region63: #{tpu_custom_call.1} parent=51 // pred_region
          %s645 = scalar_lea.vmem [#allocation2], 40
          %646 = vst [vmem:[%s645] sm:$0xff] 0
        $region64: #{tpu_custom_call.1} parent=51 // pred_fallthru
          _
        %v647 = vld [vmem:[%s380] sm:$0xff]
        %v648 = vld [vmem:[%s380 + $0x8] sm:$0xff]
        %v649 = vld [vmem:[%s380 + $0x10] sm:$0xff]
        %v650 = vld [vmem:[%s380 + $0x18] sm:$0xff]
        %v651 = vld [vmem:[%s3] sm:$0xf]
        %v652 = vld [vmem:[%s5] sm:$0x1]
        %v654 = vlaneseq
        %v655 = vshrl.u32 %v654, 7
        %v656 = vsub.s32 0, %v655
        %v657 = vrot.slane %v652, %v656
        %vm659 = vcmask 31744
        %v661 = vsel %vm659, %v647, 0
        %v664 = vsel %vm659, %v648, 0
        %v667 = vsel %vm659, %v649, 0
        %v670 = vsel %vm659, %v650, 0
        %vm672 = vcmask 1043456
        %v674 = vsel %vm672, %v651, 0
        %676 = vmatprep.subr.mxu0 0.0
        %677 = vmatpush1.msra.mxu0 %v674
        %678 = vmatprep.subr.mxu0 0.0
        %679 = vmatpush1.msra.mxu0 0.0
        %680 = vmatprep.subr.mxu0 0.0
        %681 = vmatpush1.msra.mxu0 0.0
        %682 = vmatprep.subr.mxu0 0.0
        %683 = vmatpush1.msra.mxu0 0.0
        %684 = vmatprep.subr.mxu0 0.0
        %685 = vmatpush1.msra.mxu0 0.0
        %686 = vmatprep.subr.mxu0 0.0
        %687 = vmatpush1.msra.mxu0 0.0
        %688 = vmatprep.subr.mxu0 0.0
        %689 = vmatpush1.msra.mxu0 0.0
        %690 = vmatprep.subr.mxu0 0.0
        %691 = vmatpush1.msra.mxu0 0.0
        %692 = vmatprep.subr.mxu0 0.0
        %693 = vmatpush1.msra.mxu0 0.0
        %694 = vmatprep.subr.mxu0 0.0
        %695 = vmatpush1.msra.mxu0 0.0
        %696 = vmatprep.subr.mxu0 0.0
        %697 = vmatpush1.msra.mxu0 0.0
        %698 = vmatprep.subr.mxu0 0.0
        %699 = vmatpush1.msra.mxu0 0.0
        %700 = vmatprep.subr.mxu0 0.0
        %701 = vmatpush1.msra.mxu0 0.0
        %702 = vmatprep.subr.mxu0 0.0
        %703 = vmatpush1.msra.mxu0 0.0
        %704 = vmatprep.subr.mxu0 0.0
        %705 = vmatpush1.msra.mxu0 0.0
        %706 = vmatprep.subr.mxu0 0.0
        %707 = vmatpush1.msra.mxu0 0.0
        %708 = vmatprep.subr.mxu0 0.0
        %709 = vmatpush1.msra.mxu0 0.0
        %710 = vmatprep.subr.mxu0 0.0
        %711 = vmatpush1.msra.mxu0 0.0
        %712 = vmatprep.subr.mxu0 0.0
        %713 = vmatpush1.msra.mxu0 0.0
        %714 = vmatprep.subr.mxu0 0.0
        %715 = vmatpush1.msra.mxu0 0.0
        %716 = vmatprep.subr.mxu0 0.0
        %717 = vmatpush1.msra.mxu0 0.0
        %718 = vmatprep.subr.mxu0 0.0
        %719 = vmatpush1.msra.mxu0 0.0
        %720 = vmatprep.subr.mxu0 0.0
        %721 = vmatpush1.msra.mxu0 0.0
        %722 = vmatprep.subr.mxu0 0.0
        %723 = vmatpush1.msra.mxu0 0.0
        %724 = vmatprep.subr.mxu0 0.0
        %725 = vmatpush1.msra.mxu0 0.0
        %726 = vmatprep.subr.mxu0 0.0
        %727 = vmatpush1.msra.mxu0 0.0
        %728 = vmatprep.subr.mxu0 0.0
        %729 = vmatpush1.msra.mxu0 0.0
        %730 = vmatprep.subr.mxu0 0.0
        %731 = vmatpush1.msra.mxu0 0.0
        %732 = vmatprep.subr.mxu0 0.0
        %733 = vmatpush1.msra.mxu0 0.0
        %734 = vmatprep.subr.mxu0 0.0
        %735 = vmatpush1.msra.mxu0 0.0
        %736 = vmatprep.subr.mxu0 0.0
        %737 = vmatpush1.msra.mxu0 0.0
        %738 = vmatprep.subr.mxu0 0.0
        %739 = vmatpush1.msra.mxu0 0.0
        %740 = vmatprep.mubr.f32.mxu0 0.0
        %741 = vmatmul.mubr.f32.gmra.mrb[0].mxu0 %v661
        %v742 = vpop.f32.mrb[0].mxu0
        %v743 = vadd.f32 %v657, %v742
        %v744 = vpop.f32.mrb[0].mxu0
        %745 = vmatprep.mubr.f32.mxu0 0.0
        %746 = vmatmul.mubr.f32.gmra.mrb[0].mxu0 %v664
        %v747 = vpop.f32.mrb[0].mxu0
        %v748 = vadd.f32 %v657, %v747
        %v749 = vpop.f32.mrb[0].mxu0
        %750 = vmatprep.mubr.f32.mxu0 0.0
        %751 = vmatmul.mubr.f32.gmra.mrb[0].mxu0 %v667
        %v752 = vpop.f32.mrb[0].mxu0
        %v753 = vadd.f32 %v657, %v752
        %v754 = vpop.f32.mrb[0].mxu0
        %755 = vmatprep.mubr.f32.mxu0 0.0
        %756 = vmatmul.mubr.f32.gmra.mrb[0].mxu0 %v670
        %v757 = vpop.f32.mrb[0].mxu0
        %v758 = vadd.f32 %v657, %v757
        %v759 = vpop.f32.mrb[0].mxu0
        %760 = vdwg.mxu0
        %v761 = vld [vmem:[#allocation2] sm:$0xf]
        %v762 = vld [vmem:[#allocation2 + $0x8] sm:$0xf]
        %v763 = vld [vmem:[#allocation2 + $0x10] sm:$0xf]
        %v764 = vld [vmem:[#allocation2 + $0x18] sm:$0xf]
        %v765 = vld [vmem:[#allocation2] sm:$0x1f]
        %v766 = vld [vmem:[#allocation2 + $0x8] sm:$0x1f]
        %v767 = vld [vmem:[#allocation2 + $0x10] sm:$0x1f]
        %v768 = vld [vmem:[#allocation2 + $0x18] sm:$0x1f]
        %v769 = vld [vmem:[#allocation2] sm:$0x1e]
        %v770 = vld [vmem:[#allocation2 + $0x8] sm:$0x1e]
        %v771 = vld [vmem:[#allocation2 + $0x10] sm:$0x1e]
        %v772 = vld [vmem:[#allocation2 + $0x18] sm:$0x1e]
        %v774 = vshrl.u32 %v765, 16
        %v776 = vshll.u32 %v765, 16
        %v778 = vrot.slane %v776, 1
        %v779 = vor.u32 %v774, %v778
        %v781 = vshrl.u32 %v766, 16
        %v783 = vshll.u32 %v766, 16
        %v785 = vrot.slane %v783, 1
        %v786 = vor.u32 %v781, %v785
        %v788 = vshrl.u32 %v767, 16
        %v790 = vshll.u32 %v767, 16
        %v792 = vrot.slane %v790, 1
        %v793 = vor.u32 %v788, %v792
        %v795 = vshrl.u32 %v768, 16
        %v797 = vshll.u32 %v768, 16
        %v799 = vrot.slane %v797, 1
        %v800 = vor.u32 %v795, %v799
        %v805 = vrot.slane %v769, 1
        %v806 = vrot.slane %v770, 1
        %v807 = vrot.slane %v771, 1
        %v808 = vrot.slane %v772, 1
        %v813 = vunpack.c.l.b16 %v761
        %v814 = vunpack.c.l.b16 %v779
        %v815 = vunpack.c.l.b16 %v805
        %v816 = vunpack.c.l.b16 %v762
        %v817 = vunpack.c.l.b16 %v786
        %v818 = vunpack.c.l.b16 %v806
        %v819 = vunpack.c.l.b16 %v763
        %v820 = vunpack.c.l.b16 %v793
        %v821 = vunpack.c.l.b16 %v807
        %v822 = vunpack.c.l.b16 %v764
        %v823 = vunpack.c.l.b16 %v800
        %v824 = vunpack.c.l.b16 %v808
        %v825 = vld [vmem:[#allocation3] sm:$0xf]
        %v826 = vld [vmem:[#allocation3 + $0x4] sm:$0xf]
        %v827 = vld [vmem:[#allocation3 + $0x8] sm:$0xf]
        %v828 = vld [vmem:[#allocation3 + $0xc] sm:$0xf]
        %v829 = vld [vmem:[#allocation3 + $0x10] sm:$0xf]
        %v830 = vld [vmem:[#allocation3 + $0x14] sm:$0xf]
        %v831 = vld [vmem:[#allocation3 + $0x18] sm:$0xf]
        %v832 = vld [vmem:[#allocation3 + $0x1c] sm:$0xf]
        %v833 = vld [vmem:[#allocation3 + $0x20] sm:$0xf]
        %v834 = vld [vmem:[#allocation3 + $0x24] sm:$0xf]
        %v835 = vld [vmem:[#allocation3 + $0x28] sm:$0xf]
        %v836 = vld [vmem:[#allocation3 + $0x2c] sm:$0xf]
        %v837 = vld [vmem:[#allocation3 + $0x30] sm:$0xf]
        %v838 = vld [vmem:[#allocation3 + $0x34] sm:$0xf]
        %v839 = vld [vmem:[#allocation3 + $0x38] sm:$0xf]
        %v840 = vld [vmem:[#allocation3 + $0x3c] sm:$0xf]
        %v841 = vld [vmem:[#allocation3 + $0x40] sm:$0xf]
        %v842 = vld [vmem:[#allocation3 + $0x44] sm:$0xf]
        %v843 = vld [vmem:[#allocation3 + $0x48] sm:$0xf]
        %v844 = vld [vmem:[#allocation3 + $0x4c] sm:$0xf]
        %v845 = vld [vmem:[#allocation3 + $0x50] sm:$0xf]
        %v846 = vld [vmem:[#allocation3 + $0x54] sm:$0xf]
        %v847 = vld [vmem:[#allocation3 + $0x58] sm:$0xf]
        %v848 = vld [vmem:[#allocation3 + $0x5c] sm:$0xf]
        %v849 = vld [vmem:[#allocation3 + $0x60] sm:$0xf]
        %v850 = vld [vmem:[#allocation3 + $0x64] sm:$0xf]
        %v851 = vld [vmem:[#allocation3 + $0x68] sm:$0xf]
        %v852 = vld [vmem:[#allocation3 + $0x6c] sm:$0xf]
        %v853 = vld [vmem:[#allocation3 + $0x70] sm:$0xf]
        %v854 = vld [vmem:[#allocation3 + $0x74] sm:$0xf]
        %v855 = vld [vmem:[#allocation3 + $0x78] sm:$0xf]
        %v856 = vld [vmem:[#allocation3 + $0x7c] sm:$0xf]
        %v857 = vld [vmem:[#allocation3 + $0x80] sm:$0xf]
        %v858 = vld [vmem:[#allocation3 + $0x84] sm:$0xf]
        %v859 = vld [vmem:[#allocation3 + $0x88] sm:$0xf]
        %v860 = vld [vmem:[#allocation3 + $0x8c] sm:$0xf]
        %v861 = vld [vmem:[#allocation3 + $0x90] sm:$0xf]
        %v862 = vld [vmem:[#allocation3 + $0x94] sm:$0xf]
        %v863 = vld [vmem:[#allocation3 + $0x98] sm:$0xf]
        %v864 = vld [vmem:[#allocation3 + $0x9c] sm:$0xf]
        %v865 = vld [vmem:[#allocation3 + $0xa0] sm:$0xf]
        %v866 = vld [vmem:[#allocation3 + $0xa4] sm:$0xf]
        %v867 = vld [vmem:[#allocation3 + $0xa8] sm:$0xf]
        %v868 = vld [vmem:[#allocation3 + $0xac] sm:$0xf]
        %v869 = vld [vmem:[#allocation3 + $0xb0] sm:$0xf]
        %v870 = vld [vmem:[#allocation3 + $0xb4] sm:$0xf]
        %v871 = vld [vmem:[#allocation3 + $0xb8] sm:$0xf]
        %v872 = vld [vmem:[#allocation3 + $0xbc] sm:$0xf]
        %s873 = scalar_lea.vmem [#allocation2], 8
        %v874 = vld [vmem:[%s873] sm:$0xf]
        %v875 = vld [vmem:[%s873 + $0x8] sm:$0xf]
        %v876 = vld [vmem:[%s873 + $0x10] sm:$0xf]
        %v877 = vld [vmem:[%s873 + $0x18] sm:$0xf]
        %v878 = vld [vmem:[%s873] sm:$0x1f]
        %v879 = vld [vmem:[%s873 + $0x8] sm:$0x1f]
        %v880 = vld [vmem:[%s873 + $0x10] sm:$0x1f]
        %v881 = vld [vmem:[%s873 + $0x18] sm:$0x1f]
        %v882 = vld [vmem:[%s873] sm:$0x1e]
        %v883 = vld [vmem:[%s873 + $0x8] sm:$0x1e]
        %v884 = vld [vmem:[%s873 + $0x10] sm:$0x1e]
        %v885 = vld [vmem:[%s873 + $0x18] sm:$0x1e]
        %v887 = vshrl.u32 %v878, 16
        %v889 = vshll.u32 %v878, 16
        %v891 = vrot.slane %v889, 1
        %v892 = vor.u32 %v887, %v891
        %v894 = vshrl.u32 %v879, 16
        %v896 = vshll.u32 %v879, 16
        %v898 = vrot.slane %v896, 1
        %v899 = vor.u32 %v894, %v898
        %v901 = vshrl.u32 %v880, 16
        %v903 = vshll.u32 %v880, 16
        %v905 = vrot.slane %v903, 1
        %v906 = vor.u32 %v901, %v905
        %v908 = vshrl.u32 %v881, 16
        %v910 = vshll.u32 %v881, 16
        %v912 = vrot.slane %v910, 1
        %v913 = vor.u32 %v908, %v912
        %v918 = vrot.slane %v882, 1
        %v919 = vrot.slane %v883, 1
        %v920 = vrot.slane %v884, 1
        %v921 = vrot.slane %v885, 1
        %v926 = vunpack.c.l.b16 %v874
        %v927 = vunpack.c.l.b16 %v892
        %v928 = vunpack.c.l.b16 %v918
        %v929 = vunpack.c.l.b16 %v875
        %v930 = vunpack.c.l.b16 %v899
        %v931 = vunpack.c.l.b16 %v919
        %v932 = vunpack.c.l.b16 %v876
        %v933 = vunpack.c.l.b16 %v906
        %v934 = vunpack.c.l.b16 %v920
        %v935 = vunpack.c.l.b16 %v877
        %v936 = vunpack.c.l.b16 %v913
        %v937 = vunpack.c.l.b16 %v921
        %s938 = scalar_lea.vmem [#allocation3], 192
        %v939 = vld [vmem:[%s938] sm:$0xf]
        %v940 = vld [vmem:[%s938 + $0x4] sm:$0xf]
        %v941 = vld [vmem:[%s938 + $0x8] sm:$0xf]
        %v942 = vld [vmem:[%s938 + $0xc] sm:$0xf]
        %v943 = vld [vmem:[%s938 + $0x10] sm:$0xf]
        %v944 = vld [vmem:[%s938 + $0x14] sm:$0xf]
        %v945 = vld [vmem:[%s938 + $0x18] sm:$0xf]
        %v946 = vld [vmem:[%s938 + $0x1c] sm:$0xf]
        %v947 = vld [vmem:[%s938 + $0x20] sm:$0xf]
        %v948 = vld [vmem:[%s938 + $0x24] sm:$0xf]
        %v949 = vld [vmem:[%s938 + $0x28] sm:$0xf]
        %v950 = vld [vmem:[%s938 + $0x2c] sm:$0xf]
        %v951 = vld [vmem:[%s938 + $0x30] sm:$0xf]
        %v952 = vld [vmem:[%s938 + $0x34] sm:$0xf]
        %v953 = vld [vmem:[%s938 + $0x38] sm:$0xf]
        %v954 = vld [vmem:[%s938 + $0x3c] sm:$0xf]
        %v955 = vld [vmem:[%s938 + $0x40] sm:$0xf]
        %v956 = vld [vmem:[%s938 + $0x44] sm:$0xf]
        %v957 = vld [vmem:[%s938 + $0x48] sm:$0xf]
        %v958 = vld [vmem:[%s938 + $0x4c] sm:$0xf]
        %v959 = vld [vmem:[%s938 + $0x50] sm:$0xf]
        %v960 = vld [vmem:[%s938 + $0x54] sm:$0xf]
        %v961 = vld [vmem:[%s938 + $0x58] sm:$0xf]
        %v962 = vld [vmem:[%s938 + $0x5c] sm:$0xf]
        %v963 = vld [vmem:[%s938 + $0x60] sm:$0xf]
        %v964 = vld [vmem:[%s938 + $0x64] sm:$0xf]
        %v965 = vld [vmem:[%s938 + $0x68] sm:$0xf]
        %v966 = vld [vmem:[%s938 + $0x6c] sm:$0xf]
        %v967 = vld [vmem:[%s938 + $0x70] sm:$0xf]
        %v968 = vld [vmem:[%s938 + $0x74] sm:$0xf]
        %v969 = vld [vmem:[%s938 + $0x78] sm:$0xf]
        %v970 = vld [vmem:[%s938 + $0x7c] sm:$0xf]
        %v971 = vld [vmem:[%s938 + $0x80] sm:$0xf]
        %v972 = vld [vmem:[%s938 + $0x84] sm:$0xf]
        %v973 = vld [vmem:[%s938 + $0x88] sm:$0xf]
        %v974 = vld [vmem:[%s938 + $0x8c] sm:$0xf]
        %v975 = vld [vmem:[%s938 + $0x90] sm:$0xf]
        %v976 = vld [vmem:[%s938 + $0x94] sm:$0xf]
        %v977 = vld [vmem:[%s938 + $0x98] sm:$0xf]
        %v978 = vld [vmem:[%s938 + $0x9c] sm:$0xf]
        %v979 = vld [vmem:[%s938 + $0xa0] sm:$0xf]
        %v980 = vld [vmem:[%s938 + $0xa4] sm:$0xf]
        %v981 = vld [vmem:[%s938 + $0xa8] sm:$0xf]
        %v982 = vld [vmem:[%s938 + $0xac] sm:$0xf]
        %v983 = vld [vmem:[%s938 + $0xb0] sm:$0xf]
        %v984 = vld [vmem:[%s938 + $0xb4] sm:$0xf]
        %v985 = vld [vmem:[%s938 + $0xb8] sm:$0xf]
        %v986 = vld [vmem:[%s938 + $0xbc] sm:$0xf]
        %v987 = vpack.c.b16 %v929, %v926
        %v988 = vpack.c.b16 %v930, %v927
        %v989 = vpack.c.b16 %v931, %v928
        %v990 = vpack.c.b16 %v935, %v932
        %v991 = vpack.c.b16 %v936, %v933
        %v992 = vpack.c.b16 %v937, %v934
        %v1047 = vunpack.c.l.b16 %v939
        %v1048 = vunpack.c.l.b16 %v940
        %v1049 = vunpack.c.l.b16 %v941
        %v1050 = vunpack.c.l.b16 %v942
        %v1051 = vunpack.c.l.b16 %v943
        %v1052 = vunpack.c.l.b16 %v944
        %v1053 = vunpack.c.l.b16 %v945
        %v1054 = vunpack.c.l.b16 %v946
        %v1055 = vunpack.c.l.b16 %v947
        %v1056 = vunpack.c.l.b16 %v948
        %v1057 = vunpack.c.l.b16 %v949
        %v1058 = vunpack.c.l.b16 %v950
        %v1059 = vunpack.c.l.b16 %v951
        %v1060 = vunpack.c.l.b16 %v952
        %v1061 = vunpack.c.l.b16 %v953
        %v1062 = vunpack.c.l.b16 %v954
        %v1063 = vunpack.c.l.b16 %v955
        %v1064 = vunpack.c.l.b16 %v956
        %v1065 = vunpack.c.l.b16 %v957
        %v1066 = vunpack.c.l.b16 %v958
        %v1067 = vunpack.c.l.b16 %v959
        %v1068 = vunpack.c.l.b16 %v960
        %v1069 = vunpack.c.l.b16 %v961
        %v1070 = vunpack.c.l.b16 %v962
        %v1071 = vunpack.c.l.b16 %v963
        %v1072 = vunpack.c.l.b16 %v964
        %v1073 = vunpack.c.l.b16 %v965
        %v1074 = vunpack.c.l.b16 %v966
        %v1075 = vunpack.c.l.b16 %v967
        %v1076 = vunpack.c.l.b16 %v968
        %v1077 = vunpack.c.l.b16 %v969
        %v1078 = vunpack.c.l.b16 %v970
        %v1079 = vunpack.c.l.b16 %v971
        %v1080 = vunpack.c.l.b16 %v972
        %v1081 = vunpack.c.l.b16 %v973
        %v1082 = vunpack.c.l.b16 %v974
        %v1083 = vunpack.c.l.b16 %v975
        %v1084 = vunpack.c.l.b16 %v976
        %v1085 = vunpack.c.l.b16 %v977
        %v1086 = vunpack.c.l.b16 %v978
        %v1087 = vunpack.c.l.b16 %v979
        %v1088 = vunpack.c.l.b16 %v980
        %v1089 = vunpack.c.l.b16 %v981
        %v1090 = vunpack.c.l.b16 %v982
        %v1091 = vunpack.c.l.b16 %v983
        %v1092 = vunpack.c.l.b16 %v984
        %v1093 = vunpack.c.l.b16 %v985
        %v1094 = vunpack.c.l.b16 %v986
        %v1095 = vpack.c.b16 %v1048, %v1047
        %v1096 = vpack.c.b16 %v1050, %v1049
        %v1097 = vpack.c.b16 %v1052, %v1051
        %v1098 = vpack.c.b16 %v1054, %v1053
        %v1099 = vpack.c.b16 %v1056, %v1055
        %v1100 = vpack.c.b16 %v1058, %v1057
        %v1101 = vpack.c.b16 %v1060, %v1059
        %v1102 = vpack.c.b16 %v1062, %v1061
        %v1103 = vpack.c.b16 %v1064, %v1063
        %v1104 = vpack.c.b16 %v1066, %v1065
        %v1105 = vpack.c.b16 %v1068, %v1067
        %v1106 = vpack.c.b16 %v1070, %v1069
        %v1107 = vpack.c.b16 %v1072, %v1071
        %v1108 = vpack.c.b16 %v1074, %v1073
        %v1109 = vpack.c.b16 %v1076, %v1075
        %v1110 = vpack.c.b16 %v1078, %v1077
        %v1111 = vpack.c.b16 %v1080, %v1079
        %v1112 = vpack.c.b16 %v1082, %v1081
        %v1113 = vpack.c.b16 %v1084, %v1083
        %v1114 = vpack.c.b16 %v1086, %v1085
        %v1115 = vpack.c.b16 %v1088, %v1087
        %v1116 = vpack.c.b16 %v1090, %v1089
        %v1117 = vpack.c.b16 %v1092, %v1091
        %v1118 = vpack.c.b16 %v1094, %v1093
        %1143 = vmatprep.subr.bf16.mxu0 0
        %1144 = vmatpush1.bf16.msra.mxu0 %v1095
        %1145 = vmatprep.subr.bf16.mxu0 0
        %1146 = vmatpush1.bf16.msra.mxu0 %v1096
        %1147 = vmatprep.subr.bf16.mxu0 0
        %1148 = vmatpush1.bf16.msra.mxu0 %v1097
        %1149 = vmatprep.subr.bf16.mxu0 0
        %1150 = vmatpush1.bf16.msra.mxu0 %v1098
        %1151 = vmatprep.subr.bf16.mxu0 0
        %1152 = vmatpush1.bf16.msra.mxu0 %v1099
        %1153 = vmatprep.subr.bf16.mxu0 0
        %1154 = vmatpush1.bf16.msra.mxu0 %v1100
        %1155 = vmatprep.subr.bf16.mxu0 0
        %1156 = vmatpush1.bf16.msra.mxu0 %v1101
        %1157 = vmatprep.subr.bf16.mxu0 0
        %1158 = vmatpush1.bf16.msra.mxu0 %v1102
        %1159 = vmatprep.subr.bf16.mxu0 0
        %1160 = vmatpush1.bf16.msra.mxu0 %v1103
        %1161 = vmatprep.subr.bf16.mxu0 0
        %1162 = vmatpush1.bf16.msra.mxu0 %v1104
        %1163 = vmatprep.subr.bf16.mxu0 0
        %1164 = vmatpush1.bf16.msra.mxu0 %v1105
        %1165 = vmatprep.subr.bf16.mxu0 0
        %1166 = vmatpush1.bf16.msra.mxu0 %v1106
        %1167 = vmatprep.subr.bf16.mxu0 0
        %1168 = vmatpush1.bf16.msra.mxu0 %v1107
        %1169 = vmatprep.subr.bf16.mxu0 0
        %1170 = vmatpush1.bf16.msra.mxu0 %v1108
        %1171 = vmatprep.subr.bf16.mxu0 0
        %1172 = vmatpush1.bf16.msra.mxu0 %v1109
        %1173 = vmatprep.subr.bf16.mxu0 0
        %1174 = vmatpush1.bf16.msra.mxu0 %v1110
        %1175 = vmatprep.mubr.bf16.mxu0 %v988
        %1176 = vmatmul.mubr.bf16.gmra.mrb[0].mxu0 %v987
        %v1177 = vpop.f32.mrb[0].mxu0
        %v1178 = vadd.f32 0.0, %v1177
        %v1179 = vpop.f32.mrb[0].mxu0
        %v1180 = vpop.f32.mrb[0].mxu0
        %v1181 = vadd.f32 0.0, %v1180
        %v1182 = vpop.f32.mrb[0].mxu0
        %1183 = vmatprep.mubr.bf16.mxu0 %v991
        %1184 = vmatmul.mubr.bf16.gmra.mrb[0].mxu0 %v990
        %v1185 = vpop.f32.mrb[0].mxu0
        %v1186 = vadd.f32 0.0, %v1185
        %v1187 = vpop.f32.mrb[0].mxu0
        %v1188 = vpop.f32.mrb[0].mxu0
        %v1189 = vadd.f32 0.0, %v1188
        %v1190 = vpop.f32.mrb[0].mxu0
        %1191 = vdwg.mxu0
        %1192 = vmatprep.subr.bf16.mxu0 0
        %1193 = vmatpush1.bf16.msra.mxu0 %v1111
        %1194 = vmatprep.subr.bf16.mxu0 0
        %1195 = vmatpush1.bf16.msra.mxu0 %v1112
        %1196 = vmatprep.subr.bf16.mxu0 0
        %1197 = vmatpush1.bf16.msra.mxu0 %v1113
        %1198 = vmatprep.subr.bf16.mxu0 0
        %1199 = vmatpush1.bf16.msra.mxu0 %v1114
        %1200 = vmatprep.subr.bf16.mxu0 0
        %1201 = vmatpush1.bf16.msra.mxu0 %v1115
        %1202 = vmatprep.subr.bf16.mxu0 0
        %1203 = vmatpush1.bf16.msra.mxu0 %v1116
        %1204 = vmatprep.subr.bf16.mxu0 0
        %1205 = vmatpush1.bf16.msra.mxu0 %v1117
        %1206 = vmatprep.subr.bf16.mxu0 0
        %1207 = vmatpush1.bf16.msra.mxu0 %v1118
        %1208 = vmatprep.subr.bf16.mxu0 0
        %1209 = vmatpush1.bf16.msra.mxu0 0
        %1210 = vmatprep.subr.bf16.mxu0 0
        %1211 = vmatpush1.bf16.msra.mxu0 0
        %1212 = vmatprep.subr.bf16.mxu0 0
        %1213 = vmatpush1.bf16.msra.mxu0 0
        %1214 = vmatprep.subr.bf16.mxu0 0
        %1215 = vmatpush1.bf16.msra.mxu0 0
        %1216 = vmatprep.subr.bf16.mxu0 0
        %1217 = vmatpush1.bf16.msra.mxu0 0
        %1218 = vmatprep.subr.bf16.mxu0 0
        %1219 = vmatpush1.bf16.msra.mxu0 0
        %1220 = vmatprep.subr.bf16.mxu0 0
        %1221 = vmatpush1.bf16.msra.mxu0 0
        %1222 = vmatprep.subr.bf16.mxu0 0
        %1223 = vmatpush1.bf16.msra.mxu0 0
        %1224 = vmatprep.mubr.bf16.mxu0 0
        %1225 = vmatmul.mubr.bf16.gmra.mrb[0].mxu0 %v989
        %v1226 = vpop.f32.mrb[0].mxu0
        %v1227 = vadd.f32 %v1178, %v1226
        %v1228 = vpop.f32.mrb[0].mxu0
        %v1229 = vpop.f32.mrb[0].mxu0
        %v1230 = vadd.f32 %v1181, %v1229
        %v1231 = vpop.f32.mrb[0].mxu0
        %1232 = vmatprep.mubr.bf16.mxu0 0
        %1233 = vmatmul.mubr.bf16.gmra.mrb[0].mxu0 %v992
        %v1234 = vpop.f32.mrb[0].mxu0
        %v1235 = vadd.f32 %v1186, %v1234
        %v1236 = vpop.f32.mrb[0].mxu0
        %v1237 = vpop.f32.mrb[0].mxu0
        %v1238 = vadd.f32 %v1189, %v1237
        %v1239 = vpop.f32.mrb[0].mxu0
        %1240 = vdwg.mxu0
        %v1241 = vpack.c.b16 %v816, %v813
        %v1242 = vpack.c.b16 %v817, %v814
        %v1243 = vpack.c.b16 %v818, %v815
        %v1244 = vpack.c.b16 %v822, %v819
        %v1245 = vpack.c.b16 %v823, %v820
        %v1246 = vpack.c.b16 %v824, %v821
        %v1301 = vunpack.c.l.b16 %v825
        %v1302 = vunpack.c.l.b16 %v826
        %v1303 = vunpack.c.l.b16 %v827
        %v1304 = vunpack.c.l.b16 %v828
        %v1305 = vunpack.c.l.b16 %v829
        %v1306 = vunpack.c.l.b16 %v830
        %v1307 = vunpack.c.l.b16 %v831
        %v1308 = vunpack.c.l.b16 %v832
        %v1309 = vunpack.c.l.b16 %v833
        %v1310 = vunpack.c.l.b16 %v834
        %v1311 = vunpack.c.l.b16 %v835
        %v1312 = vunpack.c.l.b16 %v836
        %v1313 = vunpack.c.l.b16 %v837
        %v1314 = vunpack.c.l.b16 %v838
        %v1315 = vunpack.c.l.b16 %v839
        %v1316 = vunpack.c.l.b16 %v840
        %v1317 = vunpack.c.l.b16 %v841
        %v1318 = vunpack.c.l.b16 %v842
        %v1319 = vunpack.c.l.b16 %v843
        %v1320 = vunpack.c.l.b16 %v844
        %v1321 = vunpack.c.l.b16 %v845
        %v1322 = vunpack.c.l.b16 %v846
        %v1323 = vunpack.c.l.b16 %v847
        %v1324 = vunpack.c.l.b16 %v848
        %v1325 = vunpack.c.l.b16 %v849
        %v1326 = vunpack.c.l.b16 %v850
        %v1327 = vunpack.c.l.b16 %v851
        %v1328 = vunpack.c.l.b16 %v852
        %v1329 = vunpack.c.l.b16 %v853
        %v1330 = vunpack.c.l.b16 %v854
        %v1331 = vunpack.c.l.b16 %v855
        %v1332 = vunpack.c.l.b16 %v856
        %v1333 = vunpack.c.l.b16 %v857
        %v1334 = vunpack.c.l.b16 %v858
        %v1335 = vunpack.c.l.b16 %v859
        %v1336 = vunpack.c.l.b16 %v860
        %v1337 = vunpack.c.l.b16 %v861
        %v1338 = vunpack.c.l.b16 %v862
        %v1339 = vunpack.c.l.b16 %v863
        %v1340 = vunpack.c.l.b16 %v864
        %v1341 = vunpack.c.l.b16 %v865
        %v1342 = vunpack.c.l.b16 %v866
        %v1343 = vunpack.c.l.b16 %v867
        %v1344 = vunpack.c.l.b16 %v868
        %v1345 = vunpack.c.l.b16 %v869
        %v1346 = vunpack.c.l.b16 %v870
        %v1347 = vunpack.c.l.b16 %v871
        %v1348 = vunpack.c.l.b16 %v872
        %v1349 = vpack.c.b16 %v1302, %v1301
        %v1350 = vpack.c.b16 %v1304, %v1303
        %v1351 = vpack.c.b16 %v1306, %v1305
        %v1352 = vpack.c.b16 %v1308, %v1307
        %v1353 = vpack.c.b16 %v1310, %v1309
        %v1354 = vpack.c.b16 %v1312, %v1311
        %v1355 = vpack.c.b16 %v1314, %v1313
        %v1356 = vpack.c.b16 %v1316, %v1315
        %v1357 = vpack.c.b16 %v1318, %v1317
        %v1358 = vpack.c.b16 %v1320, %v1319
        %v1359 = vpack.c.b16 %v1322, %v1321
        %v1360 = vpack.c.b16 %v1324, %v1323
        %v1361 = vpack.c.b16 %v1326, %v1325
        %v1362 = vpack.c.b16 %v1328, %v1327
        %v1363 = vpack.c.b16 %v1330, %v1329
        %v1364 = vpack.c.b16 %v1332, %v1331
        %v1365 = vpack.c.b16 %v1334, %v1333
        %v1366 = vpack.c.b16 %v1336, %v1335
        %v1367 = vpack.c.b16 %v1338, %v1337
        %v1368 = vpack.c.b16 %v1340, %v1339
        %v1369 = vpack.c.b16 %v1342, %v1341
        %v1370 = vpack.c.b16 %v1344, %v1343
        %v1371 = vpack.c.b16 %v1346, %v1345
        %v1372 = vpack.c.b16 %v1348, %v1347
        %1397 = vmatprep.subr.bf16.mxu0 0
        %1398 = vmatpush1.bf16.msra.mxu0 %v1349
        %1399 = vmatprep.subr.bf16.mxu0 0
        %1400 = vmatpush1.bf16.msra.mxu0 %v1350
        %1401 = vmatprep.subr.bf16.mxu0 0
        %1402 = vmatpush1.bf16.msra.mxu0 %v1351
        %1403 = vmatprep.subr.bf16.mxu0 0
        %1404 = vmatpush1.bf16.msra.mxu0 %v1352
        %1405 = vmatprep.subr.bf16.mxu0 0
        %1406 = vmatpush1.bf16.msra.mxu0 %v1353
        %1407 = vmatprep.subr.bf16.mxu0 0
        %1408 = vmatpush1.bf16.msra.mxu0 %v1354
        %1409 = vmatprep.subr.bf16.mxu0 0
        %1410 = vmatpush1.bf16.msra.mxu0 %v1355
        %1411 = vmatprep.subr.bf16.mxu0 0
        %1412 = vmatpush1.bf16.msra.mxu0 %v1356
        %1413 = vmatprep.subr.bf16.mxu0 0
        %1414 = vmatpush1.bf16.msra.mxu0 %v1357
        %1415 = vmatprep.subr.bf16.mxu0 0
        %1416 = vmatpush1.bf16.msra.mxu0 %v1358
        %1417 = vmatprep.subr.bf16.mxu0 0
        %1418 = vmatpush1.bf16.msra.mxu0 %v1359
        %1419 = vmatprep.subr.bf16.mxu0 0
        %1420 = vmatpush1.bf16.msra.mxu0 %v1360
        %1421 = vmatprep.subr.bf16.mxu0 0
        %1422 = vmatpush1.bf16.msra.mxu0 %v1361
        %1423 = vmatprep.subr.bf16.mxu0 0
        %1424 = vmatpush1.bf16.msra.mxu0 %v1362
        %1425 = vmatprep.subr.bf16.mxu0 0
        %1426 = vmatpush1.bf16.msra.mxu0 %v1363
        %1427 = vmatprep.subr.bf16.mxu0 0
        %1428 = vmatpush1.bf16.msra.mxu0 %v1364
        %1429 = vmatprep.mubr.bf16.mxu0 %v1242
        %1430 = vmatmul.mubr.bf16.gmra.mrb[0].mxu0 %v1241
        %v1431 = vpop.f32.mrb[0].mxu0
        %v1432 = vadd.f32 %v1227, %v1431
        %v1433 = vpop.f32.mrb[0].mxu0
        %v1434 = vpop.f32.mrb[0].mxu0
        %v1435 = vadd.f32 %v1230, %v1434
        %v1436 = vpop.f32.mrb[0].mxu0
        %1437 = vmatprep.mubr.bf16.mxu0 %v1245
        %1438 = vmatmul.mubr.bf16.gmra.mrb[0].mxu0 %v1244
        %v1439 = vpop.f32.mrb[0].mxu0
        %v1440 = vadd.f32 %v1235, %v1439
        %v1441 = vpop.f32.mrb[0].mxu0
        %v1442 = vpop.f32.mrb[0].mxu0
        %v1443 = vadd.f32 %v1238, %v1442
        %v1444 = vpop.f32.mrb[0].mxu0
        %1445 = vdwg.mxu0
        %1446 = vmatprep.subr.bf16.mxu0 0
        %1447 = vmatpush1.bf16.msra.mxu0 %v1365
        %1448 = vmatprep.subr.bf16.mxu0 0
        %1449 = vmatpush1.bf16.msra.mxu0 %v1366
        %1450 = vmatprep.subr.bf16.mxu0 0
        %1451 = vmatpush1.bf16.msra.mxu0 %v1367
        %1452 = vmatprep.subr.bf16.mxu0 0
        %1453 = vmatpush1.bf16.msra.mxu0 %v1368
        %1454 = vmatprep.subr.bf16.mxu0 0
        %1455 = vmatpush1.bf16.msra.mxu0 %v1369
        %1456 = vmatprep.subr.bf16.mxu0 0
        %1457 = vmatpush1.bf16.msra.mxu0 %v1370
        %1458 = vmatprep.subr.bf16.mxu0 0
        %1459 = vmatpush1.bf16.msra.mxu0 %v1371
        %1460 = vmatprep.subr.bf16.mxu0 0
        %1461 = vmatpush1.bf16.msra.mxu0 %v1372
        %1462 = vmatprep.subr.bf16.mxu0 0
        %1463 = vmatpush1.bf16.msra.mxu0 0
        %1464 = vmatprep.subr.bf16.mxu0 0
        %1465 = vmatpush1.bf16.msra.mxu0 0
        %1466 = vmatprep.subr.bf16.mxu0 0
        %1467 = vmatpush1.bf16.msra.mxu0 0
        %1468 = vmatprep.subr.bf16.mxu0 0
        %1469 = vmatpush1.bf16.msra.mxu0 0
        %1470 = vmatprep.subr.bf16.mxu0 0
        %1471 = vmatpush1.bf16.msra.mxu0 0
        %1472 = vmatprep.subr.bf16.mxu0 0
        %1473 = vmatpush1.bf16.msra.mxu0 0
        %1474 = vmatprep.subr.bf16.mxu0 0
        %1475 = vmatpush1.bf16.msra.mxu0 0
        %1476 = vmatprep.subr.bf16.mxu0 0
        %1477 = vmatpush1.bf16.msra.mxu0 0
        %1478 = vmatprep.mubr.bf16.mxu0 0
        %1479 = vmatmul.mubr.bf16.gmra.mrb[0].mxu0 %v1243
        %v1480 = vpop.f32.mrb[0].mxu0
        %v1481 = vadd.f32 %v1432, %v1480
        %v1482 = vpop.f32.mrb[0].mxu0
        %v1483 = vpop.f32.mrb[0].mxu0
        %v1484 = vadd.f32 %v1435, %v1483
        %v1485 = vpop.f32.mrb[0].mxu0
        %1486 = vmatprep.mubr.bf16.mxu0 0
        %1487 = vmatmul.mubr.bf16.gmra.mrb[0].mxu0 %v1246
        %v1488 = vpop.f32.mrb[0].mxu0
        %v1489 = vadd.f32 %v1440, %v1488
        %v1490 = vpop.f32.mrb[0].mxu0
        %v1491 = vpop.f32.mrb[0].mxu0
        %v1492 = vadd.f32 %v1443, %v1491
        %v1493 = vpop.f32.mrb[0].mxu0
        %1494 = vdwg.mxu0
        %s1495 = scalar_lea.vmem [#allocation2], 16
        %v1496 = vld [vmem:[%s1495] sm:$0xf]
        %v1497 = vld [vmem:[%s1495 + $0x8] sm:$0xf]
        %v1498 = vld [vmem:[%s1495 + $0x10] sm:$0xf]
        %v1499 = vld [vmem:[%s1495 + $0x18] sm:$0xf]
        %v1500 = vld [vmem:[%s1495] sm:$0x1f]
        %v1501 = vld [vmem:[%s1495 + $0x8] sm:$0x1f]
        %v1502 = vld [vmem:[%s1495 + $0x10] sm:$0x1f]
        %v1503 = vld [vmem:[%s1495 + $0x18] sm:$0x1f]
        %v1504 = vld [vmem:[%s1495] sm:$0x1e]
        %v1505 = vld [vmem:[%s1495 + $0x8] sm:$0x1e]
        %v1506 = vld [vmem:[%s1495 + $0x10] sm:$0x1e]
        %v1507 = vld [vmem:[%s1495 + $0x18] sm:$0x1e]
        %v1509 = vshrl.u32 %v1500, 16
        %v1511 = vshll.u32 %v1500, 16
        %v1513 = vrot.slane %v1511, 1
        %v1514 = vor.u32 %v1509, %v1513
        %v1516 = vshrl.u32 %v1501, 16
        %v1518 = vshll.u32 %v1501, 16
        %v1520 = vrot.slane %v1518, 1
        %v1521 = vor.u32 %v1516, %v1520
        %v1523 = vshrl.u32 %v1502, 16
        %v1525 = vshll.u32 %v1502, 16
        %v1527 = vrot.slane %v1525, 1
        %v1528 = vor.u32 %v1523, %v1527
        %v1530 = vshrl.u32 %v1503, 16
        %v1532 = vshll.u32 %v1503, 16
        %v1534 = vrot.slane %v1532, 1
        %v1535 = vor.u32 %v1530, %v1534
        %v1540 = vrot.slane %v1504, 1
        %v1541 = vrot.slane %v1505, 1
        %v1542 = vrot.slane %v1506, 1
        %v1543 = vrot.slane %v1507, 1
        %v1548 = vunpack.c.l.b16 %v1496
        %v1549 = vunpack.c.l.b16 %v1514
        %v1550 = vunpack.c.l.b16 %v1540
        %v1551 = vunpack.c.l.b16 %v1497
        %v1552 = vunpack.c.l.b16 %v1521
        %v1553 = vunpack.c.l.b16 %v1541
        %v1554 = vunpack.c.l.b16 %v1498
        %v1555 = vunpack.c.l.b16 %v1528
        %v1556 = vunpack.c.l.b16 %v1542
        %v1557 = vunpack.c.l.b16 %v1499
        %v1558 = vunpack.c.l.b16 %v1535
        %v1559 = vunpack.c.l.b16 %v1543
        %s1560 = scalar_lea.vmem [#allocation3], 384
        %v1561 = vld [vmem:[%s1560] sm:$0xf]
        %v1562 = vld [vmem:[%s1560 + $0x4] sm:$0xf]
        %v1563 = vld [vmem:[%s1560 + $0x8] sm:$0xf]
        %v1564 = vld [vmem:[%s1560 + $0xc] sm:$0xf]
        %v1565 = vld [vmem:[%s1560 + $0x10] sm:$0xf]
        %v1566 = vld [vmem:[%s1560 + $0x14] sm:$0xf]
        %v1567 = vld [vmem:[%s1560 + $0x18] sm:$0xf]
        %v1568 = vld [vmem:[%s1560 + $0x1c] sm:$0xf]
        %v1569 = vld [vmem:[%s1560 + $0x20] sm:$0xf]
        %v1570 = vld [vmem:[%s1560 + $0x24] sm:$0xf]
        %v1571 = vld [vmem:[%s1560 + $0x28] sm:$0xf]
        %v1572 = vld [vmem:[%s1560 + $0x2c] sm:$0xf]
        %v1573 = vld [vmem:[%s1560 + $0x30] sm:$0xf]
        %v1574 = vld [vmem:[%s1560 + $0x34] sm:$0xf]
        %v1575 = vld [vmem:[%s1560 + $0x38] sm:$0xf]
        %v1576 = vld [vmem:[%s1560 + $0x3c] sm:$0xf]
        %v1577 = vld [vmem:[%s1560 + $0x40] sm:$0xf]
        %v1578 = vld [vmem:[%s1560 + $0x44] sm:$0xf]
        %v1579 = vld [vmem:[%s1560 + $0x48] sm:$0xf]
        %v1580 = vld [vmem:[%s1560 + $0x4c] sm:$0xf]
        %v1581 = vld [vmem:[%s1560 + $0x50] sm:$0xf]
        %v1582 = vld [vmem:[%s1560 + $0x54] sm:$0xf]
        %v1583 = vld [vmem:[%s1560 + $0x58] sm:$0xf]
        %v1584 = vld [vmem:[%s1560 + $0x5c] sm:$0xf]
        %v1585 = vld [vmem:[%s1560 + $0x60] sm:$0xf]
        %v1586 = vld [vmem:[%s1560 + $0x64] sm:$0xf]
        %v1587 = vld [vmem:[%s1560 + $0x68] sm:$0xf]
        %v1588 = vld [vmem:[%s1560 + $0x6c] sm:$0xf]
        %v1589 = vld [vmem:[%s1560 + $0x70] sm:$0xf]
        %v1590 = vld [vmem:[%s1560 + $0x74] sm:$0xf]
        %v1591 = vld [vmem:[%s1560 + $0x78] sm:$0xf]
        %v1592 = vld [vmem:[%s1560 + $0x7c] sm:$0xf]
        %v1593 = vld [vmem:[%s1560 + $0x80] sm:$0xf]
        %v1594 = vld [vmem:[%s1560 + $0x84] sm:$0xf]
        %v1595 = vld [vmem:[%s1560 + $0x88] sm:$0xf]
        %v1596 = vld [vmem:[%s1560 + $0x8c] sm:$0xf]
        %v1597 = vld [vmem:[%s1560 + $0x90] sm:$0xf]
        %v1598 = vld [vmem:[%s1560 + $0x94] sm:$0xf]
        %v1599 = vld [vmem:[%s1560 + $0x98] sm:$0xf]
        %v1600 = vld [vmem:[%s1560 + $0x9c] sm:$0xf]
        %v1601 = vld [vmem:[%s1560 + $0xa0] sm:$0xf]
        %v1602 = vld [vmem:[%s1560 + $0xa4] sm:$0xf]
        %v1603 = vld [vmem:[%s1560 + $0xa8] sm:$0xf]
        %v1604 = vld [vmem:[%s1560 + $0xac] sm:$0xf]
        %v1605 = vld [vmem:[%s1560 + $0xb0] sm:$0xf]
        %v1606 = vld [vmem:[%s1560 + $0xb4] sm:$0xf]
        %v1607 = vld [vmem:[%s1560 + $0xb8] sm:$0xf]
        %v1608 = vld [vmem:[%s1560 + $0xbc] sm:$0xf]
        %v1609 = vpack.c.b16 %v1551, %v1548
        %v1610 = vpack.c.b16 %v1552, %v1549
        %v1611 = vpack.c.b16 %v1553, %v1550
        %v1612 = vpack.c.b16 %v1557, %v1554
        %v1613 = vpack.c.b16 %v1558, %v1555
        %v1614 = vpack.c.b16 %v1559, %v1556
        %v1669 = vunpack.c.l.b16 %v1561
        %v1670 = vunpack.c.l.b16 %v1562
        %v1671 = vunpack.c.l.b16 %v1563
        %v1672 = vunpack.c.l.b16 %v1564
        %v1673 = vunpack.c.l.b16 %v1565
        %v1674 = vunpack.c.l.b16 %v1566
        %v1675 = vunpack.c.l.b16 %v1567
        %v1676 = vunpack.c.l.b16 %v1568
        %v1677 = vunpack.c.l.b16 %v1569
        %v1678 = vunpack.c.l.b16 %v1570
        %v1679 = vunpack.c.l.b16 %v1571
        %v1680 = vunpack.c.l.b16 %v1572
        %v1681 = vunpack.c.l.b16 %v1573
        %v1682 = vunpack.c.l.b16 %v1574
        %v1683 = vunpack.c.l.b16 %v1575
        %v1684 = vunpack.c.l.b16 %v1576
        %v1685 = vunpack.c.l.b16 %v1577
        %v1686 = vunpack.c.l.b16 %v1578
        %v1687 = vunpack.c.l.b16 %v1579
        %v1688 = vunpack.c.l.b16 %v1580
        %v1689 = vunpack.c.l.b16 %v1581
        %v1690 = vunpack.c.l.b16 %v1582
        %v1691 = vunpack.c.l.b16 %v1583
        %v1692 = vunpack.c.l.b16 %v1584
        %v1693 = vunpack.c.l.b16 %v1585
        %v1694 = vunpack.c.l.b16 %v1586
        %v1695 = vunpack.c.l.b16 %v1587
        %v1696 = vunpack.c.l.b16 %v1588
        %v1697 = vunpack.c.l.b16 %v1589
        %v1698 = vunpack.c.l.b16 %v1590
        %v1699 = vunpack.c.l.b16 %v1591
        %v1700 = vunpack.c.l.b16 %v1592
        %v1701 = vunpack.c.l.b16 %v1593
        %v1702 = vunpack.c.l.b16 %v1594
        %v1703 = vunpack.c.l.b16 %v1595
        %v1704 = vunpack.c.l.b16 %v1596
        %v1705 = vunpack.c.l.b16 %v1597
        %v1706 = vunpack.c.l.b16 %v1598
        %v1707 = vunpack.c.l.b16 %v1599
        %v1708 = vunpack.c.l.b16 %v1600
        %v1709 = vunpack.c.l.b16 %v1601
        %v1710 = vunpack.c.l.b16 %v1602
        %v1711 = vunpack.c.l.b16 %v1603
        %v1712 = vunpack.c.l.b16 %v1604
        %v1713 = vunpack.c.l.b16 %v1605
        %v1714 = vunpack.c.l.b16 %v1606
        %v1715 = vunpack.c.l.b16 %v1607
        %v1716 = vunpack.c.l.b16 %v1608
        %v1717 = vpack.c.b16 %v1670, %v1669
        %v1718 = vpack.c.b16 %v1672, %v1671
        %v1719 = vpack.c.b16 %v1674, %v1673
        %v1720 = vpack.c.b16 %v1676, %v1675
        %v1721 = vpack.c.b16 %v1678, %v1677
        %v1722 = vpack.c.b16 %v1680, %v1679
        %v1723 = vpack.c.b16 %v1682, %v1681
        %v1724 = vpack.c.b16 %v1684, %v1683
        %v1725 = vpack.c.b16 %v1686, %v1685
        %v1726 = vpack.c.b16 %v1688, %v1687
        %v1727 = vpack.c.b16 %v1690, %v1689
        %v1728 = vpack.c.b16 %v1692, %v1691
        %v1729 = vpack.c.b16 %v1694, %v1693
        %v1730 = vpack.c.b16 %v1696, %v1695
        %v1731 = vpack.c.b16 %v1698, %v1697
        %v1732 = vpack.c.b16 %v1700, %v1699
        %v1733 = vpack.c.b16 %v1702, %v1701
        %v1734 = vpack.c.b16 %v1704, %v1703
        %v1735 = vpack.c.b16 %v1706, %v1705
        %v1736 = vpack.c.b16 %v1708, %v1707
        %v1737 = vpack.c.b16 %v1710, %v1709
        %v1738 = vpack.c.b16 %v1712, %v1711
        %v1739 = vpack.c.b16 %v1714, %v1713
        %v1740 = vpack.c.b16 %v1716, %v1715
        %1765 = vmatprep.subr.bf16.mxu0 0
        %1766 = vmatpush1.bf16.msra.mxu0 %v1717
        %1767 = vmatprep.subr.bf16.mxu0 0
        %1768 = vmatpush1.bf16.msra.mxu0 %v1718
        %1769 = vmatprep.subr.bf16.mxu0 0
        %1770 = vmatpush1.bf16.msra.mxu0 %v1719
        %1771 = vmatprep.subr.bf16.mxu0 0
        %1772 = vmatpush1.bf16.msra.mxu0 %v1720
        %1773 = vmatprep.subr.bf16.mxu0 0
        %1774 = vmatpush1.bf16.msra.mxu0 %v1721
        %1775 = vmatprep.subr.bf16.mxu0 0
        %1776 = vmatpush1.bf16.msra.mxu0 %v1722
        %1777 = vmatprep.subr.bf16.mxu0 0
        %1778 = vmatpush1.bf16.msra.mxu0 %v1723
        %1779 = vmatprep.subr.bf16.mxu0 0
        %1780 = vmatpush1.bf16.msra.mxu0 %v1724
        %1781 = vmatprep.subr.bf16.mxu0 0
        %1782 = vmatpush1.bf16.msra.mxu0 %v1725
        %1783 = vmatprep.subr.bf16.mxu0 0
        %1784 = vmatpush1.bf16.msra.mxu0 %v1726
        %1785 = vmatprep.subr.bf16.mxu0 0
        %1786 = vmatpush1.bf16.msra.mxu0 %v1727
        %1787 = vmatprep.subr.bf16.mxu0 0
        %1788 = vmatpush1.bf16.msra.mxu0 %v1728
        %1789 = vmatprep.subr.bf16.mxu0 0
        %1790 = vmatpush1.bf16.msra.mxu0 %v1729
        %1791 = vmatprep.subr.bf16.mxu0 0
        %1792 = vmatpush1.bf16.msra.mxu0 %v1730
        %1793 = vmatprep.subr.bf16.mxu0 0
        %1794 = vmatpush1.bf16.msra.mxu0 %v1731
        %1795 = vmatprep.subr.bf16.mxu0 0
        %1796 = vmatpush1.bf16.msra.mxu0 %v1732
        %1797 = vmatprep.mubr.bf16.mxu0 %v1610
        %1798 = vmatmul.mubr.bf16.gmra.mrb[0].mxu0 %v1609
        %v1799 = vpop.f32.mrb[0].mxu0
        %v1800 = vadd.f32 0.0, %v1799
        %v1801 = vpop.f32.mrb[0].mxu0
        %v1802 = vpop.f32.mrb[0].mxu0
        %v1803 = vadd.f32 0.0, %v1802
        %v1804 = vpop.f32.mrb[0].mxu0
        %1805 = vmatprep.mubr.bf16.mxu0 %v1613
        %1806 = vmatmul.mubr.bf16.gmra.mrb[0].mxu0 %v1612
        %v1807 = vpop.f32.mrb[0].mxu0
        %v1808 = vadd.f32 0.0, %v1807
        %v1809 = vpop.f32.mrb[0].mxu0
        %v1810 = vpop.f32.mrb[0].mxu0
        %v1811 = vadd.f32 0.0, %v1810
        %v1812 = vpop.f32.mrb[0].mxu0
        %1813 = vdwg.mxu0
        %1814 = vmatprep.subr.bf16.mxu0 0
        %1815 = vmatpush1.bf16.msra.mxu0 %v1733
        %1816 = vmatprep.subr.bf16.mxu0 0
        %1817 = vmatpush1.bf16.msra.mxu0 %v1734
        %1818 = vmatprep.subr.bf16.mxu0 0
        %1819 = vmatpush1.bf16.msra.mxu0 %v1735
        %1820 = vmatprep.subr.bf16.mxu0 0
        %1821 = vmatpush1.bf16.msra.mxu0 %v1736
        %1822 = vmatprep.subr.bf16.mxu0 0
        %1823 = vmatpush1.bf16.msra.mxu0 %v1737
        %1824 = vmatprep.subr.bf16.mxu0 0
        %1825 = vmatpush1.bf16.msra.mxu0 %v1738
        %1826 = vmatprep.subr.bf16.mxu0 0
        %1827 = vmatpush1.bf16.msra.mxu0 %v1739
        %1828 = vmatprep.subr.bf16.mxu0 0
        %1829 = vmatpush1.bf16.msra.mxu0 %v1740
        %1830 = vmatprep.subr.bf16.mxu0 0
        %1831 = vmatpush1.bf16.msra.mxu0 0
        %1832 = vmatprep.subr.bf16.mxu0 0
        %1833 = vmatpush1.bf16.msra.mxu0 0
        %1834 = vmatprep.subr.bf16.mxu0 0
        %1835 = vmatpush1.bf16.msra.mxu0 0
        %1836 = vmatprep.subr.bf16.mxu0 0
        %1837 = vmatpush1.bf16.msra.mxu0 0
        %1838 = vmatprep.subr.bf16.mxu0 0
        %1839 = vmatpush1.bf16.msra.mxu0 0
        %1840 = vmatprep.subr.bf16.mxu0 0
        %1841 = vmatpush1.bf16.msra.mxu0 0
        %1842 = vmatprep.subr.bf16.mxu0 0
        %1843 = vmatpush1.bf16.msra.mxu0 0
        %1844 = vmatprep.subr.bf16.mxu0 0
        %1845 = vmatpush1.bf16.msra.mxu0 0
        %1846 = vmatprep.mubr.bf16.mxu0 0
        %1847 = vmatmul.mubr.bf16.gmra.mrb[0].mxu0 %v1611
        %v1848 = vpop.f32.mrb[0].mxu0
        %v1849 = vadd.f32 %v1800, %v1848
        %v1850 = vpop.f32.mrb[0].mxu0
        %v1851 = vpop.f32.mrb[0].mxu0
        %v1852 = vadd.f32 %v1803, %v1851
        %v1853 = vpop.f32.mrb[0].mxu0
        %1854 = vmatprep.mubr.bf16.mxu0 0
        %1855 = vmatmul.mubr.bf16.gmra.mrb[0].mxu0 %v1614
        %v1856 = vpop.f32.mrb[0].mxu0
        %v1857 = vadd.f32 %v1808, %v1856
        %v1858 = vpop.f32.mrb[0].mxu0
        %v1859 = vpop.f32.mrb[0].mxu0
        %v1860 = vadd.f32 %v1811, %v1859
        %v1861 = vpop.f32.mrb[0].mxu0
        %1862 = vdwg.mxu0
        %v1863 = vadd.f32 %v1481, %v1849
        %v1864 = vadd.f32 %v1484, %v1852
        %v1865 = vadd.f32 %v1489, %v1857
        %v1866 = vadd.f32 %v1492, %v1860
        %v1867 = vld [vmem:[%s7] sm:$0x1]
        %v1869 = vlaneseq
        %v1870 = vshrl.u32 %v1869, 7
        %v1871 = vsub.s32 0, %v1870
        %v1872 = vrot.slane %v1867, %v1871
        %v1874 = vadd.f32 %v1863, %v1872
        %v1875 = vadd.f32 %v1864, %v1872
        %v1876 = vadd.f32 %v1865, %v1872
        %v1877 = vadd.f32 %v1866, %v1872
        %vm1878 = vcmp.ge.f32.partialorder %v1874, 0.0
        %vm1879 = vcmp.ge.f32.partialorder %v1875, 0.0
        %vm1880 = vcmp.ge.f32.partialorder %v1876, 0.0
        %vm1881 = vcmp.ge.f32.partialorder %v1877, 0.0
        %v1882 = vmul.f32 %v1874, 0.1
        %v1883 = vmul.f32 %v1875, 0.1
        %v1884 = vmul.f32 %v1876, 0.1
        %v1885 = vmul.f32 %v1877, 0.1
        %v1886 = vsel %vm1878, %v1874, %v1882
        %v1887 = vsel %vm1879, %v1875, %v1883
        %v1888 = vsel %vm1880, %v1876, %v1884
        %v1889 = vsel %vm1881, %v1877, %v1885
        %v1890 = vadd.f32 %v1886, %v743
        %v1891 = vadd.f32 %v1887, %v748
        %v1892 = vadd.f32 %v1888, %v753
        %v1893 = vadd.f32 %v1889, %v758
        %1894 = vst [vmem:[%s362] sm:$0xff] %v1890
        %1895 = vst [vmem:[%s362 + $0x8] sm:$0xff] %v1891
        %1896 = vst [vmem:[%s362 + $0x10] sm:$0xff] %v1892
        %1897 = vst [vmem:[%s362 + $0x18] sm:$0xff] %v1893
        %s1898 = sand.u32 %s227, 1
        %s1899 = scalar_lea.sflag [#allocation5], %s1898
        %s1900 = sand.u32 %s227, 1
        %s1901 = smul.addr %s1900, 32
        %s1902 = scalar_lea.vmem [#allocation6], %s1901
        // Predicated region
        $region65: #{tpu_custom_call.1} parent=51 // pred_check
          %p1903 = pneg %p237
        $region66: #{tpu_custom_call.1} parent=51 // pred_check_branch
          %1905 = sbr.rel (%p1903) target = $region68
        $region67: #{tpu_custom_call.1} parent=51 // pred_region
          %s1907 = ssub.s32 512, 512
          %1908 = vsyncadd %s1899, %s1907
          %s1909 = smul.addr %s28, 4
          %s1910 = smul.addr %s27, 8
          %s1911 = sadd.s32 %s1909, %s1910
          %s1912 = smul.addr %s1911, 128
          %s1913 = scalar_lea.hbm %s8, %s1912
          %s1914 = sshll.u32 %s1902, 4
          %s1915 = int_to_ptr.vmem [resolvable:$true] %s1914
          %1920 = dma.vmem_to_hbm [thread:$0]  %s1915, 512, %s1913, %s1899, 128, 128, 8
        $region68: #{tpu_custom_call.1} parent=51 // pred_fallthru
          _
      $region52: #{tpu_custom_call.1} parent=5 // pred_fallthru
        _
      %p1921 = scmp.le.s32.totalorder 2, %s18
      // Predicated region
      $region69: #{tpu_custom_call.1} parent=5 // pred_check
        %p1922 = pneg %p1921
      $region70: #{tpu_custom_call.1} parent=5 // pred_check_branch
        %1924 = sbr.rel (%p1922) target = $region72
      $region71: #{tpu_custom_call.1} parent=5 // pred_region
        %s1925 = ssub.s32 %s18, 2
        // Predicated region
        $region73: #{tpu_custom_call.1} parent=71 // pred_check
          %p1926 = pneg %p243
        $region74: #{tpu_custom_call.1} parent=71 // pred_check_branch
          %1928 = sbr.rel (%p1926) target = $region76
        $region75: #{tpu_custom_call.1} parent=71 // pred_region
          %s1929 = sand.u32 %s228, 1
          %s1930 = scalar_lea.sflag [#allocation5], %s1929
          %s1931 = sand.u32 %s228, 1
          %s1932 = smul.addr %s1931, 32
          %s1933 = scalar_lea.vmem [#allocation6], %s1932
          %1934 = dma.done %s1930, 512
        $region76: #{tpu_custom_call.1} parent=71 // pred_fallthru
          _
      $region72: #{tpu_custom_call.1} parent=5 // pred_fallthru
        _
    $region6: #{tpu_custom_call.1} parent=1 // loop_footer
      %s22 = sadd.s32 1, %s18
    $region7: #{tpu_custom_call.1} parent=1 // loop_footer_branch
      %17 = sbr.rel target = $region3
    $region8: #{tpu_custom_call.1} parent=1 // loop_exit
      _
    %1935 = vsyncpa [#allocation4], 1
    %s1936 = scalar_lea.sflag [#allocation4], 1
    %1937 = vsyncpa %s1936, 1
    %1938 = vsyncpa [#allocation5], 1
    %s1939 = scalar_lea.sflag [#allocation5], 1
    %1940 = vsyncpa %s1939, 1

</llo_original>
